<compile_context>
chip_gen: v7x
topology: tpu7x:2x2x1
jax: 0.10.0
libtpu: 0.0.40
codegen_flags: <defaults>
</compile_context>

<pallas_src>
from functools import partial

import jax
import jax.numpy as jnp
from jax import lax
from jax.experimental import pallas as pl
from jax.experimental.pallas import tpu as pltpu


# --------------------------------------------------------------------------- #
# Kernel: TB batch elements per grid step.
# --------------------------------------------------------------------------- #
def complex_out_kernel(xy_ref, w_in_ref, b_in_ref, w_out_ref, b_out_ref,
                       w_ql_ref, b_ql_ref, pool_ref, expand_ref, out_ref,
                       *, n_x):
    f32 = jnp.float32
    cdt = w_in_ref.dtype                    # MXU-input dtype (f32 / bf16)
    xy = xy_ref[...]                        # (TB, R, 2D)  rows: x[0..n_x-1], y, pad
    TB, R, two_d = xy.shape
    D = two_d // 2
    H = pool_ref.shape[-1]

    # ---- ALL input-side complex linears in ONE MXU matmul over TB*R rows ----
    # columns: [0,2D)=glimpse pro_q, [2D,4D)=glimpse pro_k,
    #          [4D,6D)=glimpse pro_v, [6D,8D)=logit pro_k
    proj = (jnp.dot(xy.reshape(TB * R, two_d), w_in_ref[...],
                    preferred_element_type=f32)
            + b_in_ref[...]).reshape(TB, R, 4 * two_d)

    q_g = proj[:, n_x:n_x + 1, 0:two_d]          # (TB, 1, 2D)   glimpse query (y row)
    k_g = proj[:, :, two_d:2 * two_d]            # (TB, R, 2D)   glimpse keys
    v_g = proj[:, :, 2 * two_d:3 * two_d]        # (TB, R, 2D)   glimpse values
    k_l = proj[:, :n_x, 3 * two_d:]              # (TB, n_x, 2D) logit keys (x rows)

    qr, qi = q_g[..., :D], q_g[..., D:]          # (TB, 1, D)
    kr, ki = k_g[..., :D], k_g[..., D:]          # (TB, R, D)

    # ---- glimpse attention: scores = Q . conj(K) per head -------------------
    # (positive dk^-0.5 scale cancels inside cos(angle) and is dropped)
    pr = kr * qr + ki * qi                       # (TB, R, D) real contributions
    pi = kr * qi - ki * qr                       # (TB, R, D) imag contributions
    # merged real/imag head-pooling: ONE MXU push instead of two
    p = jnp.concatenate([pr, pi], axis=0)        # (2TB, R, D)
    s = jnp.dot(p.reshape(2 * TB * R, D).astype(cdt), pool_ref[...],
                preferred_element_type=f32).reshape(2 * TB, R, H)
    s_r, s_i = s[:TB], s[TB:]                    # (TB, R, H)

    sq = s_r * s_r + s_i * s_i
    # note: for 0 < sq < 1e-30 the clamp makes cos(angle) approximate (benign)
    inv_mag = lax.rsqrt(jnp.maximum(sq, 1e-30))
    cosang = jnp.where(sq > 0, s_r * inv_mag, 1.0)           # angle(0) == 0
    # logits bounded to [-10, 10] -> safe to skip max-subtraction in softmax
    e = jnp.exp(10.0 * cosang)                   # (TB, R, H)
    row = lax.broadcasted_iota(jnp.int32, (1, R, 1), 1)
    e = jnp.where(row < n_x + 1, e, 0.0)         # mask sublane pad rows
    denom = jnp.sum(e, axis=1, keepdims=True)    # (TB, 1, H)
    sm = e * pl.reciprocal(denom, approx=True)   # softmax via EUP reciprocal

    # attn = softmax @ V : expand per-head weights onto their dk lanes
    sm_lanes = jnp.dot(sm.reshape(TB * R, H).astype(cdt), expand_ref[...],
                       preferred_element_type=f32).reshape(TB, R, two_d)
    heads = jnp.sum(sm_lanes * v_g, axis=1)      # (TB, 2D)

    # glimpse out_proj, then logit pro_q (stacked-complex matmuls)
    g = jnp.dot(heads.astype(cdt), w_out_ref[...],
                preferred_element_type=f32) + b_out_ref[...]
    q2 = jnp.dot(g.astype(cdt), w_ql_ref[...],
                 preferred_element_type=f32) + b_ql_ref[...]         # (TB, 2D)

    # ---- Logit head ----------------------------------------------------------
    # [q2_i | -q2_r] via an XLU lane roll + sign mask (no lane-concat relayout)
    lane = lax.broadcasted_iota(jnp.int32, (1, two_d), 1)
    sign = jnp.where(lane < D, 1.0, -1.0)
    q2_rot = pltpu.roll(q2, shift=D, axis=1) * sign          # (TB, 2D)

    # ONE batched MXU dot gives Re and Im of q2 . conj(k_l) together
    q2s = jnp.concatenate([q2[:, None, :], q2_rot[:, None, :]], axis=1)  # (TB,2,2D)
    a = jnp.einsum('bqd,bkd->bqk', q2s.astype(cdt), k_l.astype(cdt),
                   preferred_element_type=f32)   # (TB, 2, n_x): rows [Re, Im]

    sq2 = jnp.sum(a * a, axis=1, keepdims=True)  # (TB, 1, n_x) = |a|^2
    inv = lax.rsqrt(jnp.maximum(sq2, 1e-30))
    mag = (D ** -0.5) * sq2 * inv                # scaling * |a|
    dirfac = 10.0 * jnp.tanh(mag) * inv          # 10 * tanh(|attn|) / |a|
    csign = jnp.where(
        lax.broadcasted_iota(jnp.int32, (1, 2, 1), 1) == 0, 1.0, -1.0)
    c = dirfac * a * csign                       # compatibility: [Re ; -Im]
    sgm = pl.reciprocal(1.0 + jnp.exp(-c), approx=True)      # sigmoid via EUP rcp
    power = jnp.clip(jnp.sum(sgm * sgm, axis=1), 0.0, 1.0)   # (TB, n_x)

    # lane-dense store: one (1, TB*n_x) row per grid step
    out_ref[...] = jnp.concatenate(
        [power[b:b + 1, :] for b in range(TB)], axis=1)


# --------------------------------------------------------------------------- #
# Wrapper: stacked-complex weights, padded lane-dense packed inputs.
# --------------------------------------------------------------------------- #
def _cstack_w(wr, wi):
    top = jnp.concatenate([wr, wi], axis=1)
    bot = jnp.concatenate([-wi, wr], axis=1)
    return jnp.concatenate([top, bot], axis=0)        # (2D, 2D)


def _cstack_b(br, bi):
    return jnp.concatenate([br, bi], axis=1)          # (1, 2D)


def _pick_tb(batch, max_tb=8):
    """Largest divisor of `batch` that is <= max_tb (batch rows per grid step)."""
    tb = 1
    for cand in range(2, min(batch, max_tb) + 1):
        if batch % cand == 0:
            tb = cand
    return tb


def complex_out_forward(x_r, x_i, y_r, y_i, W, Bias, num_heads,
                        mxu_dtype=jnp.float32, tb=None):
    f32 = jnp.float32
    B, N, D = x_r.shape
    dk = D // num_heads
    if tb is None:
        tb = _pick_tb(B)
    assert B % tb == 0
    grid_b = B // tb

    # rows per batch padded to a sublane multiple -> in-kernel reshapes are
    # layout no-ops; pad rows are masked inside the kernel.
    R = max(8, ((N + 1 + 7) // 8) * 8)

    # packed complex input rows: x[0..N-1], y, zero padding; real|imag on lanes
    # TODO(synk): accept an upstream-packed tensor at production sizes.
    xr = jnp.concatenate([x_r, x_i], axis=-1)                    # (B, N, 2D)
    yr = jnp.concatenate([y_r, y_i], axis=-1)                    # (B, 1, 2D)
    pad = jnp.zeros((B, R - (N + 1), 2 * D), f32)
    xy = jnp.concatenate([xr, yr, pad], axis=1).astype(mxu_dtype)  # (B, R, 2D)

    # weight order in W: 0 g.pro_q, 1 g.pro_k, 2 g.pro_v, 3 g.out_proj,
    #                    4 logit.pro_q, 5 logit.pro_k   (logit.pro_v unused)
    def sw(i):
        return _cstack_w(W[i, 0], W[i, 1])

    def sb(i):
        return _cstack_b(Bias[i, 0], Bias[i, 1])

    w_in = jnp.concatenate([sw(0), sw(1), sw(2), sw(5)], axis=1).astype(mxu_dtype)
    b_in = jnp.concatenate([sb(0), sb(1), sb(2), sb(5)], axis=1).astype(f32)
    w_out, b_out = sw(3).astype(mxu_dtype), sb(3).astype(f32)
    w_ql, b_ql = sw(4).astype(mxu_dtype), sb(4).astype(f32)

    head_of = jnp.arange(D, dtype=jnp.int32) // dk
    pool = (head_of[:, None] ==
            jnp.arange(num_heads, dtype=jnp.int32)[None, :]).astype(mxu_dtype)  # (D,H)
    expand = jnp.concatenate([pool.T, pool.T], axis=1)                           # (H,2D)

    out = pl.pallas_call(
        partial(complex_out_kernel, n_x=N),
        out_shape=jax.ShapeDtypeStruct((grid_b, 1, tb * N), f32),
        grid=(grid_b,),
        in_specs=[
            pl.BlockSpec((tb, R, 2 * D), lambda g: (g, 0, 0)),       # packed x|y
            pl.BlockSpec((2 * D, 8 * D), lambda g: (0, 0)),          # fused in-proj W
            pl.BlockSpec((1, 8 * D), lambda g: (0, 0)),              # fused in-proj b
            pl.BlockSpec((2 * D, 2 * D), lambda g: (0, 0)),          # out_proj W
            pl.BlockSpec((1, 2 * D), lambda g: (0, 0)),              # out_proj b
            pl.BlockSpec((2 * D, 2 * D), lambda g: (0, 0)),          # logit pro_q W
            pl.BlockSpec((1, 2 * D), lambda g: (0, 0)),              # logit pro_q b
            pl.BlockSpec((D, num_heads), lambda g: (0, 0)),          # head pool
            pl.BlockSpec((num_heads, 2 * D), lambda g: (0, 0)),      # head expand
        ],
        out_specs=pl.BlockSpec((None, 1, tb * N), lambda g: (g, 0, 0)),
        compiler_params=pltpu.CompilerParams(
            dimension_semantics=("parallel",)),
    )(xy, w_in, b_in, w_out, b_out, w_ql, b_ql, pool, expand)
    return out.reshape(B, N)


# --------------------------------------------------------------------------- #
# Pure-JAX complex64 reference (mirrors the PyTorch module).
# --------------------------------------------------------------------------- #
def ref_forward(x, y, W, Bias, num_heads):
    B, N, D = x.shape
    dk = D // num_heads

    def clin(idx, z):
        w = (W[idx, 0] + 1j * W[idx, 1]).astype(jnp.complex64)
        b = (Bias[idx, 0, 0] + 1j * Bias[idx, 1, 0]).astype(jnp.complex64)
        return z @ w + b

    # glimpse attention (Glimpse=1: query from y only)
    Qy = clin(0, y)                                            # (B,1,D)
    K = jnp.concatenate([clin(1, x), clin(1, y)], axis=1)      # (B,N+1,D)
    V = jnp.concatenate([clin(2, x), clin(2, y)], axis=1)
    Qh = Qy.reshape(B, 1, num_heads, dk).transpose(2, 0, 1, 3)
    Kh = K.reshape(B, N + 1, num_heads, dk).transpose(2, 0, 1, 3)
    Vh = V.reshape(B, N + 1, num_heads, dk).transpose(2, 0, 1, 3)
    aw = (dk ** -0.5) * jnp.einsum('hbqd,hbkd->hbqk', Qh, jnp.conj(Kh))
    sm = jax.nn.softmax(10.0 * jnp.cos(jnp.angle(aw)), axis=-1).astype(jnp.complex64)
    att = jnp.einsum('hbqk,hbkd->hbqd', sm, Vh)
    heads = att.transpose(1, 2, 0, 3).reshape(B, 1, D)
    g = clin(3, heads)                                         # (B,1,D)
    # Logit head
    Q2 = clin(4, g)
    K2 = clin(5, x)
    a2 = (D ** -0.5) * jnp.einsum('bqd,bkd->bqk', Q2, jnp.conj(K2))   # (B,1,N)
    comp = 10.0 * jnp.tanh(jnp.abs(a2)) * jnp.exp(-1j * jnp.angle(a2))
    comp = comp[:, 0, :]
    sig = lambda t: 1.0 / (1.0 + jnp.exp(-t))
    power = sig(comp.real) ** 2 + sig(comp.imag) ** 2
    return jnp.clip(power, 0.0, 1.0)


if __name__ == "__main__":
    B, N, D, H = 2, 8, 32, 4        # batch, graph size, embed_dim (=x_dim=y_dim), heads

    key = jax.random.PRNGKey(0)
    k = jax.random.split(key, 8)
    # deterministic synthetic parameters: 6 ComplexLinear(D, D) layers
    W = jax.random.normal(k[0], (6, 2, D, D), jnp.float32) * (D ** -0.5)
    Bias = jax.random.normal(k[1], (6, 2, 1, D), jnp.float32) * 0.05

    # inputs: x (B, N, D) complex, y (B, 1, D) complex (as real/imag pairs)
    x_r = jax.random.normal(k[2], (B, N, D), jnp.float32)
    x_i = jax.random.normal(k[3], (B, N, D), jnp.float32)
    y_r = jax.random.normal(k[4], (B, 1, D), jnp.float32)
    y_i = jax.random.normal(k[5], (B, 1, D), jnp.float32)

    out = complex_out_forward(x_r, x_i, y_r, y_i, W, Bias, H)
    out = jax.block_until_ready(out)
    assert out.shape == (B, N) and out.dtype == jnp.float32

    ref = ref_forward((x_r + 1j * x_i).astype(jnp.complex64),
                      (y_r + 1j * y_i).astype(jnp.complex64), W, Bias, H)
    ref = jax.block_until_ready(ref)
    # tolerance loosened vs the exact-divide version: softmax / sigmoid now use
    # the EUP approximate reciprocal (perf-review item).  bf16 MXU mode
    # (mxu_dtype=jnp.bfloat16, for v6e/v7x) would need ~3e-2.
    assert jnp.allclose(out, ref, rtol=5e-3, atol=5e-3), (out, ref)

    print("KERNEL_OK")
</pallas_src>

<mosaic_0001>
module attributes {stable_mosaic.version = 11 : i64} {
  func.func @complex_out_kernel(%arg0: i32, %arg1: memref<2x16x64xf32, #tpu.memory_space<vmem>>, %arg2: memref<64x256xf32, #tpu.memory_space<vmem>>, %arg3: memref<1x256xf32, #tpu.memory_space<vmem>>, %arg4: memref<64x64xf32, #tpu.memory_space<vmem>>, %arg5: memref<1x64xf32, #tpu.memory_space<vmem>>, %arg6: memref<64x64xf32, #tpu.memory_space<vmem>>, %arg7: memref<1x64xf32, #tpu.memory_space<vmem>>, %arg8: memref<32x4xf32, #tpu.memory_space<vmem>>, %arg9: memref<4x64xf32, #tpu.memory_space<vmem>>, %arg10: memref<1x1x16xf32, #tpu.memory_space<vmem>>) attributes {dimension_semantics = [#tpu.dimension_semantics<parallel>], iteration_bounds = array<i64: 1>, scalar_prefetch = 0 : i64, scratch_operands = 0 : i64, tpu.core_type = #tpu.core_type<tc>, window_params = [{transform_indices = @transform_0, window_bounds = array<i64: 2, 16, 64>}, {pipeline_mode = #tpu.pipeline_mode<synchronous>, transform_indices = @transform_1, window_bounds = array<i64: 64, 256>}, {pipeline_mode = #tpu.pipeline_mode<synchronous>, transform_indices = @transform_2, window_bounds = array<i64: 1, 256>}, {pipeline_mode = #tpu.pipeline_mode<synchronous>, transform_indices = @transform_3, window_bounds = array<i64: 64, 64>}, {pipeline_mode = #tpu.pipeline_mode<synchronous>, transform_indices = @transform_4, window_bounds = array<i64: 1, 64>}, {pipeline_mode = #tpu.pipeline_mode<synchronous>, transform_indices = @transform_5, window_bounds = array<i64: 64, 64>}, {pipeline_mode = #tpu.pipeline_mode<synchronous>, transform_indices = @transform_6, window_bounds = array<i64: 1, 64>}, {pipeline_mode = #tpu.pipeline_mode<synchronous>, transform_indices = @transform_7, window_bounds = array<i64: 32, 4>}, {pipeline_mode = #tpu.pipeline_mode<synchronous>, transform_indices = @transform_8, window_bounds = array<i64: 4, 64>}, {transform_indices = @transform_9, window_bounds = array<i64: 1, 1, 16>}]} {
    %c0 = arith.constant 0 : index
    %c0_0 = arith.constant 0 : index
    %c0_1 = arith.constant 0 : index
    %0 = vector.load %arg1[%c0, %c0_0, %c0_1] : memref<2x16x64xf32, #tpu.memory_space<vmem>>, vector<2x16x64xf32>
    %1 = vector.shape_cast %0 : vector<2x16x64xf32> to vector<32x64xf32>
    %c0_2 = arith.constant 0 : index
    %c0_3 = arith.constant 0 : index
    %2 = vector.load %arg2[%c0_2, %c0_3] : memref<64x256xf32, #tpu.memory_space<vmem>>, vector<64x256xf32>
    %cst = arith.constant dense<0.000000e+00> : vector<32x256xf32>
    %3 = tpu.matmul %1, %2, %cst {dimension_numbers = #tpu.dot_dimension_numbers<[1], [0], [0], [1], [0, 0, 1, 1], [], []>} : vector<32x64xf32>, vector<64x256xf32>, vector<32x256xf32> -> vector<32x256xf32>
    %c0_4 = arith.constant 0 : index
    %c0_5 = arith.constant 0 : index
    %4 = vector.load %arg3[%c0_4, %c0_5] : memref<1x256xf32, #tpu.memory_space<vmem>>, vector<1x256xf32>
    %5 = vector.broadcast %4 : vector<1x256xf32> to vector<32x256xf32>
    %6 = arith.addf %3, %5 : vector<32x256xf32>
    %7 = vector.shape_cast %6 : vector<32x256xf32> to vector<2x16x256xf32>
    %8 = vector.extract_strided_slice %7 {offsets = [0, 8, 0], sizes = [2, 1, 64], strides = [1, 1, 1]} : vector<2x16x256xf32> to vector<2x1x64xf32>
    %9 = vector.extract_strided_slice %7 {offsets = [0, 0, 64], sizes = [2, 16, 64], strides = [1, 1, 1]} : vector<2x16x256xf32> to vector<2x16x64xf32>
    %10 = vector.extract_strided_slice %7 {offsets = [0, 0, 128], sizes = [2, 16, 64], strides = [1, 1, 1]} : vector<2x16x256xf32> to vector<2x16x64xf32>
    %11 = vector.extract_strided_slice %7 {offsets = [0, 0, 192], sizes = [2, 8, 64], strides = [1, 1, 1]} : vector<2x16x256xf32> to vector<2x8x64xf32>
    %12 = vector.extract_strided_slice %8 {offsets = [0, 0, 0], sizes = [2, 1, 32], strides = [1, 1, 1]} : vector<2x1x64xf32> to vector<2x1x32xf32>
    %13 = vector.extract_strided_slice %8 {offsets = [0, 0, 32], sizes = [2, 1, 32], strides = [1, 1, 1]} : vector<2x1x64xf32> to vector<2x1x32xf32>
    %14 = vector.extract_strided_slice %9 {offsets = [0, 0, 0], sizes = [2, 16, 32], strides = [1, 1, 1]} : vector<2x16x64xf32> to vector<2x16x32xf32>
    %15 = vector.extract_strided_slice %9 {offsets = [0, 0, 32], sizes = [2, 16, 32], strides = [1, 1, 1]} : vector<2x16x64xf32> to vector<2x16x32xf32>
    %16 = vector.broadcast %12 : vector<2x1x32xf32> to vector<2x16x32xf32>
    %17 = arith.mulf %14, %16 : vector<2x16x32xf32>
    %18 = vector.broadcast %13 : vector<2x1x32xf32> to vector<2x16x32xf32>
    %19 = arith.mulf %15, %18 : vector<2x16x32xf32>
    %20 = arith.addf %17, %19 : vector<2x16x32xf32>
    %21 = vector.broadcast %13 : vector<2x1x32xf32> to vector<2x16x32xf32>
    %22 = arith.mulf %14, %21 : vector<2x16x32xf32>
    %23 = vector.broadcast %12 : vector<2x1x32xf32> to vector<2x16x32xf32>
    %24 = arith.mulf %15, %23 : vector<2x16x32xf32>
    %25 = arith.subf %22, %24 : vector<2x16x32xf32>
    %26 = tpu.concatenate %20, %25 in 0 : vector<2x16x32xf32>, vector<2x16x32xf32> -> vector<4x16x32xf32>
    %27 = vector.shape_cast %26 : vector<4x16x32xf32> to vector<64x32xf32>
    %c0_6 = arith.constant 0 : index
    %c0_7 = arith.constant 0 : index
    %28 = vector.load %arg8[%c0_6, %c0_7] : memref<32x4xf32, #tpu.memory_space<vmem>>, vector<32x4xf32>
    %cst_8 = arith.constant dense<0.000000e+00> : vector<64x4xf32>
    %29 = tpu.matmul %27, %28, %cst_8 {dimension_numbers = #tpu.dot_dimension_numbers<[1], [0], [0], [1], [0, 0, 1, 1], [], []>} : vector<64x32xf32>, vector<32x4xf32>, vector<64x4xf32> -> vector<64x4xf32>
    %30 = vector.shape_cast %29 : vector<64x4xf32> to vector<4x16x4xf32>
    %31 = vector.extract_strided_slice %30 {offsets = [0, 0, 0], sizes = [2, 16, 4], strides = [1, 1, 1]} : vector<4x16x4xf32> to vector<2x16x4xf32>
    %32 = vector.extract_strided_slice %30 {offsets = [2, 0, 0], sizes = [2, 16, 4], strides = [1, 1, 1]} : vector<4x16x4xf32> to vector<2x16x4xf32>
    %33 = arith.mulf %31, %31 : vector<2x16x4xf32>
    %34 = arith.mulf %32, %32 : vector<2x16x4xf32>
    %35 = arith.addf %33, %34 : vector<2x16x4xf32>
    %cst_9 = arith.constant 1.000000e-30 : f32
    %36 = vector.broadcast %cst_9 : f32 to vector<2x16x4xf32>
    %37 = arith.maximumf %35, %36 : vector<2x16x4xf32>
    %38 = math.rsqrt %37 : vector<2x16x4xf32>
    %cst_10 = arith.constant 0.000000e+00 : f32
    %39 = vector.broadcast %cst_10 : f32 to vector<2x16x4xf32>
    %40 = arith.cmpf ogt, %35, %39 : vector<2x16x4xf32>
    %41 = arith.mulf %31, %38 : vector<2x16x4xf32>
    %cst_11 = arith.constant 1.000000e+00 : f32
    %42 = vector.broadcast %cst_11 : f32 to vector<2x16x4xf32>
    %43 = arith.select %40, %41, %42 : vector<2x16x4xi1>, vector<2x16x4xf32>
    %cst_12 = arith.constant 1.000000e+01 : f32
    %44 = vector.broadcast %cst_12 : f32 to vector<2x16x4xf32>
    %45 = arith.mulf %44, %43 : vector<2x16x4xf32>
    %46 = math.exp %45 : vector<2x16x4xf32>
    %47 = tpu.iota {dimensions = array<i32: 1>} : vector<1x16x1xi32>
    %c9_i32 = arith.constant 9 : i32
    %48 = vector.broadcast %c9_i32 : i32 to vector<1x16x1xi32>
    %49 = arith.cmpi slt, %47, %48 : vector<1x16x1xi32>
    %cst_13 = arith.constant 0.000000e+00 : f32
    %50 = vector.shape_cast %49 : vector<1x16x1xi1> to vector<1x16x1xi1>
    %51 = vector.broadcast %50 : vector<1x16x1xi1> to vector<2x16x4xi1>
    %52 = vector.broadcast %cst_13 : f32 to vector<2x16x4xf32>
    %53 = arith.select %51, %46, %52 : vector<2x16x4xi1>, vector<2x16x4xf32>
    %cst_14 = arith.constant dense<0.000000e+00> : vector<2x4xf32>
    %54 = vector.multi_reduction <add>, %53, %cst_14 [1] : vector<2x16x4xf32> to vector<2x4xf32>
    %55 = vector.shape_cast %54 : vector<2x4xf32> to vector<2x1x4xf32>
    %56 = tpu.reciprocal %55 {approx = true} : vector<2x1x4xf32> -> vector<2x1x4xf32>
    %57 = vector.broadcast %56 : vector<2x1x4xf32> to vector<2x16x4xf32>
    %58 = arith.mulf %53, %57 : vector<2x16x4xf32>
    %59 = vector.shape_cast %58 : vector<2x16x4xf32> to vector<32x4xf32>
    %c0_15 = arith.constant 0 : index
    %c0_16 = arith.constant 0 : index
    %60 = vector.load %arg9[%c0_15, %c0_16] : memref<4x64xf32, #tpu.memory_space<vmem>>, vector<4x64xf32>
    %cst_17 = arith.constant dense<0.000000e+00> : vector<32x64xf32>
    %61 = tpu.matmul %59, %60, %cst_17 {dimension_numbers = #tpu.dot_dimension_numbers<[1], [0], [0], [1], [0, 0, 1, 1], [], []>} : vector<32x4xf32>, vector<4x64xf32>, vector<32x64xf32> -> vector<32x64xf32>
    %62 = vector.shape_cast %61 : vector<32x64xf32> to vector<2x16x64xf32>
    %63 = arith.mulf %62, %10 : vector<2x16x64xf32>
    %cst_18 = arith.constant dense<0.000000e+00> : vector<2x64xf32>
    %64 = vector.multi_reduction <add>, %63, %cst_18 [1] : vector<2x16x64xf32> to vector<2x64xf32>
    %c0_19 = arith.constant 0 : index
    %c0_20 = arith.constant 0 : index
    %65 = vector.load %arg4[%c0_19, %c0_20] : memref<64x64xf32, #tpu.memory_space<vmem>>, vector<64x64xf32>
    %cst_21 = arith.constant dense<0.000000e+00> : vector<2x64xf32>
    %66 = tpu.matmul %64, %65, %cst_21 {dimension_numbers = #tpu.dot_dimension_numbers<[1], [0], [0], [1], [0, 0, 1, 1], [], []>} : vector<2x64xf32>, vector<64x64xf32>, vector<2x64xf32> -> vector<2x64xf32>
    %c0_22 = arith.constant 0 : index
    %c0_23 = arith.constant 0 : index
    %67 = vector.load %arg5[%c0_22, %c0_23] : memref<1x64xf32, #tpu.memory_space<vmem>>, vector<1x64xf32>
    %68 = vector.broadcast %67 : vector<1x64xf32> to vector<2x64xf32>
    %69 = arith.addf %66, %68 : vector<2x64xf32>
    %c0_24 = arith.constant 0 : index
    %c0_25 = arith.constant 0 : index
    %70 = vector.load %arg6[%c0_24, %c0_25] : memref<64x64xf32, #tpu.memory_space<vmem>>, vector<64x64xf32>
    %cst_26 = arith.constant dense<0.000000e+00> : vector<2x64xf32>
    %71 = tpu.matmul %69, %70, %cst_26 {dimension_numbers = #tpu.dot_dimension_numbers<[1], [0], [0], [1], [0, 0, 1, 1], [], []>} : vector<2x64xf32>, vector<64x64xf32>, vector<2x64xf32> -> vector<2x64xf32>
    %c0_27 = arith.constant 0 : index
    %c0_28 = arith.constant 0 : index
    %72 = vector.load %arg7[%c0_27, %c0_28] : memref<1x64xf32, #tpu.memory_space<vmem>>, vector<1x64xf32>
    %73 = vector.broadcast %72 : vector<1x64xf32> to vector<2x64xf32>
    %74 = arith.addf %71, %73 : vector<2x64xf32>
    %75 = tpu.iota {dimensions = array<i32: 1>} : vector<1x64xi32>
    %c32_i32 = arith.constant 32 : i32
    %76 = vector.broadcast %c32_i32 : i32 to vector<1x64xi32>
    %77 = arith.cmpi slt, %75, %76 : vector<1x64xi32>
    %cst_29 = arith.constant 1.000000e+00 : f32
    %cst_30 = arith.constant -1.000000e+00 : f32
    %78 = vector.broadcast %cst_29 : f32 to vector<1x64xf32>
    %79 = vector.broadcast %cst_30 : f32 to vector<1x64xf32>
    %80 = arith.select %77, %78, %79 : vector<1x64xi1>, vector<1x64xf32>
    %c32_i32_31 = arith.constant 32 : i32
    %81 = tpu.dynamic_rotate %74 by %c32_i32_31 dim 1 : vector<2x64xf32>, i32 -> vector<2x64xf32>
    %82 = vector.broadcast %80 : vector<1x64xf32> to vector<2x64xf32>
    %83 = arith.mulf %81, %82 : vector<2x64xf32>
    %84 = vector.shape_cast %74 : vector<2x64xf32> to vector<2x1x64xf32>
    %85 = vector.shape_cast %83 : vector<2x64xf32> to vector<2x1x64xf32>
    %86 = tpu.concatenate %84, %85 in 1 : vector<2x1x64xf32>, vector<2x1x64xf32> -> vector<2x2x64xf32>
    "tpu.trace_start"() <{level = 10 : i32, message = "bqd,bkd->bqk"}> : () -> ()
    %cst_32 = arith.constant dense<0.000000e+00> : vector<2x2x8xf32>
    %87 = tpu.matmul %86, %11, %cst_32 {dimension_numbers = #tpu.dot_dimension_numbers<[2], [2], [1], [1], [0, 0, 0, 1, 1, 1], [0], [0]>} : vector<2x2x64xf32>, vector<2x8x64xf32>, vector<2x2x8xf32> -> vector<2x2x8xf32>
    "tpu.trace_stop"() : () -> ()
    %88 = arith.mulf %87, %87 : vector<2x2x8xf32>
    %cst_33 = arith.constant dense<0.000000e+00> : vector<2x8xf32>
    %89 = vector.multi_reduction <add>, %88, %cst_33 [1] : vector<2x2x8xf32> to vector<2x8xf32>
    %90 = vector.shape_cast %89 : vector<2x8xf32> to vector<2x1x8xf32>
    %cst_34 = arith.constant 1.000000e-30 : f32
    %91 = vector.broadcast %cst_34 : f32 to vector<2x1x8xf32>
    %92 = arith.maximumf %90, %91 : vector<2x1x8xf32>
    %93 = math.rsqrt %92 : vector<2x1x8xf32>
    %cst_35 = arith.constant 0.176776692 : f32
    %94 = vector.broadcast %cst_35 : f32 to vector<2x1x8xf32>
    %95 = arith.mulf %94, %90 : vector<2x1x8xf32>
    %96 = arith.mulf %95, %93 : vector<2x1x8xf32>
    %97 = math.tanh %96 : vector<2x1x8xf32>
    %cst_36 = arith.constant 1.000000e+01 : f32
    %98 = vector.broadcast %cst_36 : f32 to vector<2x1x8xf32>
    %99 = arith.mulf %98, %97 : vector<2x1x8xf32>
    %100 = arith.mulf %99, %93 : vector<2x1x8xf32>
    %101 = tpu.iota {dimensions = array<i32: 1>} : vector<1x2x1xi32>
    %c0_i32 = arith.constant 0 : i32
    %102 = vector.broadcast %c0_i32 : i32 to vector<1x2x1xi32>
    %103 = arith.cmpi eq, %101, %102 : vector<1x2x1xi32>
    %cst_37 = arith.constant 1.000000e+00 : f32
    %cst_38 = arith.constant -1.000000e+00 : f32
    %104 = vector.broadcast %cst_37 : f32 to vector<1x2x1xf32>
    %105 = vector.broadcast %cst_38 : f32 to vector<1x2x1xf32>
    %106 = arith.select %103, %104, %105 : vector<1x2x1xi1>, vector<1x2x1xf32>
    %107 = vector.broadcast %100 : vector<2x1x8xf32> to vector<2x2x8xf32>
    %108 = arith.mulf %107, %87 : vector<2x2x8xf32>
    %109 = vector.broadcast %106 : vector<1x2x1xf32> to vector<2x2x8xf32>
    %110 = arith.mulf %108, %109 : vector<2x2x8xf32>
    %cst_39 = arith.constant 0.000000e+00 : f32
    %111 = vector.broadcast %cst_39 : f32 to vector<2x2x8xf32>
    %112 = arith.subf %111, %110 : vector<2x2x8xf32>
    %113 = math.exp %112 : vector<2x2x8xf32>
    %cst_40 = arith.constant 1.000000e+00 : f32
    %114 = vector.broadcast %cst_40 : f32 to vector<2x2x8xf32>
    %115 = arith.addf %114, %113 : vector<2x2x8xf32>
    %116 = tpu.reciprocal %115 {approx = true} : vector<2x2x8xf32> -> vector<2x2x8xf32>
    %117 = arith.mulf %116, %116 : vector<2x2x8xf32>
    %cst_41 = arith.constant dense<0.000000e+00> : vector<2x8xf32>
    %118 = vector.multi_reduction <add>, %117, %cst_41 [1] : vector<2x2x8xf32> to vector<2x8xf32>
    %cst_42 = arith.constant 0.000000e+00 : f32
    %cst_43 = arith.constant 1.000000e+00 : f32
    %119 = vector.broadcast %cst_42 : f32 to vector<2x8xf32>
    %120 = arith.maximumf %119, %118 : vector<2x8xf32>
    %121 = vector.broadcast %cst_43 : f32 to vector<2x8xf32>
    %122 = arith.minimumf %121, %120 : vector<2x8xf32>
    %123 = vector.extract_strided_slice %122 {offsets = [0, 0], sizes = [1, 8], strides = [1, 1]} : vector<2x8xf32> to vector<1x8xf32>
    %124 = vector.extract_strided_slice %122 {offsets = [1, 0], sizes = [1, 8], strides = [1, 1]} : vector<2x8xf32> to vector<1x8xf32>
    %125 = tpu.concatenate %123, %124 in 1 : vector<1x8xf32>, vector<1x8xf32> -> vector<1x16xf32>
    %c0_44 = arith.constant 0 : index
    %c0_45 = arith.constant 0 : index
    %c0_46 = arith.constant 0 : index
    %126 = vector.load %arg10[%c0_44, %c0_45, %c0_46] : memref<1x1x16xf32, #tpu.memory_space<vmem>>, vector<1x1x16xf32>
    %127 = vector.shape_cast %126 : vector<1x1x16xf32> to vector<1x16xf32>
    %128 = vector.shape_cast %125 : vector<1x16xf32> to vector<1x1x16xf32>
    tpu.vector_store %arg10[%c0_44, %c0_45, %c0_46], %128 {strides = array<i32>} : memref<1x1x16xf32, #tpu.memory_space<vmem>>, vector<1x1x16xf32>,
    return
  }
  func.func @transform_0(%arg0: i32) -> (i32, i32, i32) {
    %c0_i32 = arith.constant 0 : i32
    %c0_i32_0 = arith.constant 0 : i32
    %c0_i32_1 = arith.constant 0 : i32
    return %arg0, %c0_i32, %c0_i32_0 : i32, i32, i32
  }
  func.func @transform_1(%arg0: i32) -> (i32, i32) {
    %c0_i32 = arith.constant 0 : i32
    %c0_i32_0 = arith.constant 0 : i32
    %c0_i32_1 = arith.constant 0 : i32
    return %c0_i32, %c0_i32_0 : i32, i32
  }
  func.func @transform_2(%arg0: i32) -> (i32, i32) {
    %c0_i32 = arith.constant 0 : i32
    %c0_i32_0 = arith.constant 0 : i32
    %c0_i32_1 = arith.constant 0 : i32
    return %c0_i32, %c0_i32_0 : i32, i32
  }
  func.func @transform_3(%arg0: i32) -> (i32, i32) {
    %c0_i32 = arith.constant 0 : i32
    %c0_i32_0 = arith.constant 0 : i32
    %c0_i32_1 = arith.constant 0 : i32
    return %c0_i32, %c0_i32_0 : i32, i32
  }
  func.func @transform_4(%arg0: i32) -> (i32, i32) {
    %c0_i32 = arith.constant 0 : i32
    %c0_i32_0 = arith.constant 0 : i32
    %c0_i32_1 = arith.constant 0 : i32
    return %c0_i32, %c0_i32_0 : i32, i32
  }
  func.func @transform_5(%arg0: i32) -> (i32, i32) {
    %c0_i32 = arith.constant 0 : i32
    %c0_i32_0 = arith.constant 0 : i32
    %c0_i32_1 = arith.constant 0 : i32
    return %c0_i32, %c0_i32_0 : i32, i32
  }
  func.func @transform_6(%arg0: i32) -> (i32, i32) {
    %c0_i32 = arith.constant 0 : i32
    %c0_i32_0 = arith.constant 0 : i32
    %c0_i32_1 = arith.constant 0 : i32
    return %c0_i32, %c0_i32_0 : i32, i32
  }
  func.func @transform_7(%arg0: i32) -> (i32, i32) {
    %c0_i32 = arith.constant 0 : i32
    %c0_i32_0 = arith.constant 0 : i32
    %c0_i32_1 = arith.constant 0 : i32
    return %c0_i32, %c0_i32_0 : i32, i32
  }
  func.func @transform_8(%arg0: i32) -> (i32, i32) {
    %c0_i32 = arith.constant 0 : i32
    %c0_i32_0 = arith.constant 0 : i32
    %c0_i32_1 = arith.constant 0 : i32
    return %c0_i32, %c0_i32_0 : i32, i32
  }
  func.func @transform_9(%arg0: i32) -> (i32, i32, i32) {
    %c0_i32 = arith.constant 0 : i32
    %c0_i32_0 = arith.constant 0 : i32
    %c0_i32_1 = arith.constant 0 : i32
    return %arg0, %c0_i32, %c0_i32_0 : i32, i32, i32
  }
}

</mosaic_0001>

<llo_original>
// kernel: tpu_custom_call.1
$region0: #{tpu_custom_call.1}
  #allocation0 [shape = 'u32[]', space=smem, size = 0x4, offset = 0x4, fixed_abs, tag = 'smem constant byte address 0x4 - core index']
  #allocation1 [shape = 'u32[144,128]{1,0:T(1,128)}', space=vmem, size = 0x12000, scoped, tag = 'internal scratch']
  %s0 = inlined_call_operand.vmem [shape: f32[2,16,64], index: 0, kind: input, shape index: {}]
  %s1 = inlined_call_operand.hbm [shape: f32[64,256], index: 1, kind: input, shape index: {}]
  %s2 = inlined_call_operand.vmem [shape: f32[1,256], index: 2, kind: input, shape index: {}]
  %s3 = inlined_call_operand.hbm [shape: f32[64,64], index: 3, kind: input, shape index: {}]
  %s4 = inlined_call_operand.vmem [shape: f32[1,64], index: 4, kind: input, shape index: {}]
  %s5 = inlined_call_operand.hbm [shape: f32[64,64], index: 5, kind: input, shape index: {}]
  %s6 = inlined_call_operand.vmem [shape: f32[1,64], index: 6, kind: input, shape index: {}]
  %s7 = inlined_call_operand.vmem [shape: f32[32,4], index: 7, kind: input, shape index: {}]
  %s8 = inlined_call_operand.vmem [shape: f32[4,64], index: 8, kind: input, shape index: {}]
  %s9 = inlined_call_operand.hbm [shape: f32[1,1,16], index: 9, kind: output, shape index: {}]
  %s10 = sld [smem:[#allocation0]]
  $region58: #{tpu_custom_call.1} parent=0
    _
  %s12 = ssub.s32 1, %s10
  %s13 = scalar_select 0, %s12, %s10
  $region1: #{tpu_custom_call.1} parent=0
    #allocation2 [shape = 'u8[65536]{0}', space=vmem, size = 0x10000, scoped, tag = 'input window, operand 1, single buffered']
    #allocation3 [shape = 's32[1]{0}', space=sflag, size = 0x4, scoped, tag = 'scoped memory for tpu_custom_call.1']
    #allocation4 [shape = 's32[1]{0}', space=sflag, size = 0x4, scoped, tag = 'scoped memory for tpu_custom_call.1']
    #allocation5 [shape = 'u8[32768]{0}', space=vmem, size = 0x8000, scoped, tag = 'input window, operand 3, single buffered']
    #allocation6 [shape = 's32[1]{0}', space=sflag, size = 0x4, scoped, tag = 'scoped memory for tpu_custom_call.1']
    #allocation7 [shape = 'u8[32768]{0}', space=vmem, size = 0x8000, scoped, tag = 'input window, operand 5, single buffered']
    #allocation8 [shape = 'u8[512]{0}', space=vmem, size = 0x400, scoped, tag = 'output window, operand 0, single buffered']
    %14 = vsyncpa [#allocation3], 0
    %15 = vsyncpa [#allocation6], 0
    %16 = vsyncpa [#allocation4], 0
    // Predicated region
    $region2: #{tpu_custom_call.1} parent=1 // pred_check
      _
    $region3: #{tpu_custom_call.1} parent=1 // pred_check_branch
      %18 = sbr.rel (0) target = $region5
    $region4: #{tpu_custom_call.1} parent=1 // pred_region
      _
    $region5: #{tpu_custom_call.1} parent=1 // pred_fallthru
      _
    // Predicated region
    $region6: #{tpu_custom_call.1} parent=1 // pred_check
      _
    $region7: #{tpu_custom_call.1} parent=1 // pred_check_branch
      %20 = sbr.rel (0) target = $region9
    $region8: #{tpu_custom_call.1} parent=1 // pred_region
      %s22 = ssub.s32 2048, 2048
      %23 = vsyncadd [#allocation3], %s22
      %s24 = sshll.u32 [#allocation2], 4
      %s25 = int_to_ptr.vmem [resolvable:$true] %s24
      %30 = dma.hbm_to_vmem [thread:$0]  %s1, 2048, %s25, [#allocation3], 256, 256, 16
    $region9: #{tpu_custom_call.1} parent=1 // pred_fallthru
      _
    // Predicated region
    $region10: #{tpu_custom_call.1} parent=1 // pred_check
      _
    $region11: #{tpu_custom_call.1} parent=1 // pred_check_branch
      %32 = sbr.rel (0) target = $region13
    $region12: #{tpu_custom_call.1} parent=1 // pred_region
      _
    $region13: #{tpu_custom_call.1} parent=1 // pred_fallthru
      _
    // Predicated region
    $region14: #{tpu_custom_call.1} parent=1 // pred_check
      _
    $region15: #{tpu_custom_call.1} parent=1 // pred_check_branch
      %34 = sbr.rel (0) target = $region17
    $region16: #{tpu_custom_call.1} parent=1 // pred_region
      %s36 = ssub.s32 1024, 1024
      %37 = vsyncadd [#allocation6], %s36
      %s38 = sshll.u32 [#allocation5], 4
      %s39 = int_to_ptr.vmem [resolvable:$true] %s38
      %44 = dma.hbm_to_vmem [thread:$0]  %s3, 1024, %s39, [#allocation6], 128, 128, 8
    $region17: #{tpu_custom_call.1} parent=1 // pred_fallthru
      _
    // Predicated region
    $region18: #{tpu_custom_call.1} parent=1 // pred_check
      _
    $region19: #{tpu_custom_call.1} parent=1 // pred_check_branch
      %46 = sbr.rel (0) target = $region21
    $region20: #{tpu_custom_call.1} parent=1 // pred_region
      _
    $region21: #{tpu_custom_call.1} parent=1 // pred_fallthru
      _
    // Predicated region
    $region22: #{tpu_custom_call.1} parent=1 // pred_check
      _
    $region23: #{tpu_custom_call.1} parent=1 // pred_check_branch
      %48 = sbr.rel (0) target = $region25
    $region24: #{tpu_custom_call.1} parent=1 // pred_region
      %s50 = ssub.s32 1024, 1024
      %51 = vsyncadd [#allocation6], %s50
      %s52 = sshll.u32 [#allocation7], 4
      %s53 = int_to_ptr.vmem [resolvable:$true] %s52
      %58 = dma.hbm_to_vmem [thread:$0]  %s5, 1024, %s53, [#allocation6], 128, 128, 8
    $region25: #{tpu_custom_call.1} parent=1 // pred_fallthru
      _
    // Predicated region
    $region26: #{tpu_custom_call.1} parent=1 // pred_check
      _
    $region27: #{tpu_custom_call.1} parent=1 // pred_check_branch
      %60 = sbr.rel (0) target = $region29
    $region28: #{tpu_custom_call.1} parent=1 // pred_region
      _
    $region29: #{tpu_custom_call.1} parent=1 // pred_fallthru
      _
    // Predicated region
    $region30: #{tpu_custom_call.1} parent=1 // pred_check
      _
    $region31: #{tpu_custom_call.1} parent=1 // pred_check_branch
      %62 = sbr.rel (0) target = $region33
    $region32: #{tpu_custom_call.1} parent=1 // pred_region
      _
    $region33: #{tpu_custom_call.1} parent=1 // pred_fallthru
      _
    // Predicated region
    $region34: #{tpu_custom_call.1} parent=1 // pred_check
      _
    $region35: #{tpu_custom_call.1} parent=1 // pred_check_branch
      %64 = sbr.rel (0) target = $region37
    $region36: #{tpu_custom_call.1} parent=1 // pred_region
      _
    $region37: #{tpu_custom_call.1} parent=1 // pred_fallthru
      _
    // Predicated region
    $region38: #{tpu_custom_call.1} parent=1 // pred_check
      _
    $region39: #{tpu_custom_call.1} parent=1 // pred_check_branch
      %66 = sbr.rel (0) target = $region41
    $region40: #{tpu_custom_call.1} parent=1 // pred_region
      %67 = dma.done [#allocation3], 2048
    $region41: #{tpu_custom_call.1} parent=1 // pred_fallthru
      _
    // Predicated region
    $region42: #{tpu_custom_call.1} parent=1 // pred_check
      _
    $region43: #{tpu_custom_call.1} parent=1 // pred_check_branch
      %69 = sbr.rel (0) target = $region45
    $region44: #{tpu_custom_call.1} parent=1 // pred_region
      %70 = dma.done [#allocation6], 1024
    $region45: #{tpu_custom_call.1} parent=1 // pred_fallthru
      _
    // Predicated region
    $region46: #{tpu_custom_call.1} parent=1 // pred_check
      _
    $region47: #{tpu_custom_call.1} parent=1 // pred_check_branch
      %72 = sbr.rel (0) target = $region49
    $region48: #{tpu_custom_call.1} parent=1 // pred_region
      %73 = dma.done [#allocation6], 1024
    $region49: #{tpu_custom_call.1} parent=1 // pred_fallthru
      _
    %v74 = vld [vmem:[%s0] sm:$0xff]
    %v75 = vld [vmem:[%s0 + $0x8] sm:$0xff]
    %v76 = vld [vmem:[%s0 + $0x10] sm:$0xff]
    %v77 = vld [vmem:[%s0 + $0x18] sm:$0xff]
    %v78 = vld [vmem:[#allocation2] sm:$0xff]
    %v79 = vld [vmem:[#allocation2 + $0x8] sm:$0xff]
    %v80 = vld [vmem:[#allocation2 + $0x10] sm:$0xff]
    %v81 = vld [vmem:[#allocation2 + $0x18] sm:$0xff]
    %v82 = vld [vmem:[#allocation2 + $0x20] sm:$0xff]
    %v83 = vld [vmem:[#allocation2 + $0x28] sm:$0xff]
    %v84 = vld [vmem:[#allocation2 + $0x30] sm:$0xff]
    %v85 = vld [vmem:[#allocation2 + $0x38] sm:$0xff]
    %v86 = vld [vmem:[#allocation2 + $0x40] sm:$0xff]
    %v87 = vld [vmem:[#allocation2 + $0x48] sm:$0xff]
    %v88 = vld [vmem:[#allocation2 + $0x50] sm:$0xff]
    %v89 = vld [vmem:[#allocation2 + $0x58] sm:$0xff]
    %v90 = vld [vmem:[#allocation2 + $0x60] sm:$0xff]
    %v91 = vld [vmem:[#allocation2 + $0x68] sm:$0xff]
    %v92 = vld [vmem:[#allocation2 + $0x70] sm:$0xff]
    %v93 = vld [vmem:[#allocation2 + $0x78] sm:$0xff]
    %v94 = vld [vmem:[%s2] sm:$0x3]
    %v96 = vlaneseq
    %v97 = vshrl.u32 %v96, 7
    %v98 = vsub.s32 0, %v97
    %v99 = vrot.slane %v94, %v98
    %v100 = vlaneseq
    %v101 = vshrl.u32 %v100, 7
    %v102 = vsub.s32 1, %v101
    %v103 = vrot.slane %v94, %v102
    %vm106 = vcmask 523264
    %v108 = vsel %vm106, %v74, 0
    %v111 = vsel %vm106, %v75, 0
    %v114 = vsel %vm106, %v76, 0
    %v117 = vsel %vm106, %v77, 0
    %119 = vmatprep.subr.mxu0 %v79
    %120 = vmatpush1.msra.mxu0 %v78
    %121 = vmatprep.subr.mxu0 %v81
    %122 = vmatpush1.msra.mxu0 %v80
    %123 = vmatprep.subr.mxu0 %v83
    %124 = vmatpush1.msra.mxu0 %v82
    %125 = vmatprep.subr.mxu0 %v85
    %126 = vmatpush1.msra.mxu0 %v84
    %127 = vmatprep.subr.mxu0 %v87
    %128 = vmatpush1.msra.mxu0 %v86
    %129 = vmatprep.subr.mxu0 %v89
    %130 = vmatpush1.msra.mxu0 %v88
    %131 = vmatprep.subr.mxu0 %v91
    %132 = vmatpush1.msra.mxu0 %v90
    %133 = vmatprep.subr.mxu0 %v93
    %134 = vmatpush1.msra.mxu0 %v92
    %135 = vmatprep.subr.mxu0 0.0
    %136 = vmatpush1.msra.mxu0 0.0
    %137 = vmatprep.subr.mxu0 0.0
    %138 = vmatpush1.msra.mxu0 0.0
    %139 = vmatprep.subr.mxu0 0.0
    %140 = vmatpush1.msra.mxu0 0.0
    %141 = vmatprep.subr.mxu0 0.0
    %142 = vmatpush1.msra.mxu0 0.0
    %143 = vmatprep.subr.mxu0 0.0
    %144 = vmatpush1.msra.mxu0 0.0
    %145 = vmatprep.subr.mxu0 0.0
    %146 = vmatpush1.msra.mxu0 0.0
    %147 = vmatprep.subr.mxu0 0.0
    %148 = vmatpush1.msra.mxu0 0.0
    %149 = vmatprep.subr.mxu0 0.0
    %150 = vmatpush1.msra.mxu0 0.0
    %151 = vmatprep.subr.mxu0 0.0
    %152 = vmatpush1.msra.mxu0 0.0
    %153 = vmatprep.subr.mxu0 0.0
    %154 = vmatpush1.msra.mxu0 0.0
    %155 = vmatprep.subr.mxu0 0.0
    %156 = vmatpush1.msra.mxu0 0.0
    %157 = vmatprep.subr.mxu0 0.0
    %158 = vmatpush1.msra.mxu0 0.0
    %159 = vmatprep.subr.mxu0 0.0
    %160 = vmatpush1.msra.mxu0 0.0
    %161 = vmatprep.subr.mxu0 0.0
    %162 = vmatpush1.msra.mxu0 0.0
    %163 = vmatprep.subr.mxu0 0.0
    %164 = vmatpush1.msra.mxu0 0.0
    %165 = vmatprep.subr.mxu0 0.0
    %166 = vmatpush1.msra.mxu0 0.0
    %167 = vmatprep.subr.mxu0 0.0
    %168 = vmatpush1.msra.mxu0 0.0
    %169 = vmatprep.subr.mxu0 0.0
    %170 = vmatpush1.msra.mxu0 0.0
    %171 = vmatprep.subr.mxu0 0.0
    %172 = vmatpush1.msra.mxu0 0.0
    %173 = vmatprep.subr.mxu0 0.0
    %174 = vmatpush1.msra.mxu0 0.0
    %175 = vmatprep.subr.mxu0 0.0
    %176 = vmatpush1.msra.mxu0 0.0
    %177 = vmatprep.subr.mxu0 0.0
    %178 = vmatpush1.msra.mxu0 0.0
    %179 = vmatprep.subr.mxu0 0.0
    %180 = vmatpush1.msra.mxu0 0.0
    %181 = vmatprep.subr.mxu0 0.0
    %182 = vmatpush1.msra.mxu0 0.0
    %183 = vmatprep.mubr.f32.mxu0 0.0
    %184 = vmatmul.mubr.f32.gmra.mrb[0].mxu0 %v108
    %v185 = vpop.f32.mrb[0].mxu0
    %v186 = vadd.f32 %v99, %v185
    %v187 = vpop.f32.mrb[0].mxu0
    %v188 = vadd.f32 %v103, %v187
    %189 = vmatprep.mubr.f32.mxu0 0.0
    %190 = vmatmul.mubr.f32.gmra.mrb[0].mxu0 %v111
    %v191 = vpop.f32.mrb[0].mxu0
    %v192 = vadd.f32 %v99, %v191
    %v193 = vpop.f32.mrb[0].mxu0
    %v194 = vadd.f32 %v103, %v193
    %195 = vmatprep.mubr.f32.mxu0 0.0
    %196 = vmatmul.mubr.f32.gmra.mrb[0].mxu0 %v114
    %v197 = vpop.f32.mrb[0].mxu0
    %v198 = vadd.f32 %v99, %v197
    %v199 = vpop.f32.mrb[0].mxu0
    %v200 = vadd.f32 %v103, %v199
    %201 = vmatprep.mubr.f32.mxu0 0.0
    %202 = vmatmul.mubr.f32.gmra.mrb[0].mxu0 %v117
    %v203 = vpop.f32.mrb[0].mxu0
    %v204 = vadd.f32 %v99, %v203
    %v205 = vpop.f32.mrb[0].mxu0
    %v206 = vadd.f32 %v103, %v205
    %207 = vdwg.mxu0
    %v208 = vlaneseq
    %v209 = vshrl.u32 %v208, 7
    %v210 = vsub.s32 0, %v209
    %v211 = vrot.slane %v192, %v210
    %v212 = vlaneseq
    %v213 = vshrl.u32 %v212, 7
    %v214 = vsub.s32 0, %v213
    %v215 = vrot.slane %v204, %v214
    %218 = vrot.lane.b32.xlu0 %v211, 64
    %v219 = vpop.permute.xlu0 %218
    %220 = vrot.lane.b32.xlu0 %v215, 64
    %v221 = vpop.permute.xlu0 %220
    %v224 = vmul.f32 %v186, %v219
    %v225 = vmul.f32 %v192, %v219
    %v226 = vmul.f32 %v198, %v221
    %v227 = vmul.f32 %v204, %v221
    %232 = vrot.lane.b32.xlu0 %v224, 96
    %v233 = vpop.permute.xlu0 %232
    %234 = vrot.lane.b32.xlu0 %v225, 96
    %v235 = vpop.permute.xlu0 %234
    %236 = vrot.lane.b32.xlu0 %v226, 96
    %v237 = vpop.permute.xlu0 %236
    %238 = vrot.lane.b32.xlu0 %v227, 96
    %v239 = vpop.permute.xlu0 %238
    %v244 = vadd.f32 %v224, %v233
    %v245 = vadd.f32 %v225, %v235
    %v246 = vadd.f32 %v226, %v237
    %v247 = vadd.f32 %v227, %v239
    %248 = vrot.lane.b32.xlu0 %v211, 32
    %v249 = vpop.permute.xlu0 %248
    %250 = vrot.lane.b32.xlu0 %v215, 32
    %v251 = vpop.permute.xlu0 %250
    %v254 = vmul.f32 %v186, %v249
    %v255 = vmul.f32 %v192, %v249
    %v256 = vmul.f32 %v198, %v251
    %v257 = vmul.f32 %v204, %v251
    %258 = vrot.lane.b32.xlu0 %v211, 96
    %v259 = vpop.permute.xlu0 %258
    %260 = vrot.lane.b32.xlu0 %v215, 96
    %v261 = vpop.permute.xlu0 %260
    %v264 = vmul.f32 %v186, %v259
    %v265 = vmul.f32 %v192, %v259
    %v266 = vmul.f32 %v198, %v261
    %v267 = vmul.f32 %v204, %v261
    %272 = vrot.lane.b32.xlu0 %v264, 96
    %v273 = vpop.permute.xlu0 %272
    %274 = vrot.lane.b32.xlu0 %v265, 96
    %v275 = vpop.permute.xlu0 %274
    %276 = vrot.lane.b32.xlu0 %v266, 96
    %v277 = vpop.permute.xlu0 %276
    %278 = vrot.lane.b32.xlu0 %v267, 96
    %v279 = vpop.permute.xlu0 %278
    %v284 = vsub.f32 %v254, %v273
    %v285 = vsub.f32 %v255, %v275
    %v286 = vsub.f32 %v256, %v277
    %v287 = vsub.f32 %v257, %v279
    %v288 = vld [vmem:[%s7] sm:$0xff]
    %v289 = vld [vmem:[%s7 + $0x8] sm:$0xff]
    %v290 = vld [vmem:[%s7 + $0x10] sm:$0xff]
    %v291 = vld [vmem:[%s7 + $0x18] sm:$0xff]
    %300 = vrot.lane.b32.xlu0 %v244, 64
    %v301 = vpop.permute.xlu0 %300
    %302 = vrot.lane.b32.xlu0 %v245, 64
    %v303 = vpop.permute.xlu0 %302
    %304 = vrot.lane.b32.xlu0 %v246, 64
    %v305 = vpop.permute.xlu0 %304
    %306 = vrot.lane.b32.xlu0 %v247, 64
    %v307 = vpop.permute.xlu0 %306
    %308 = vrot.lane.b32.xlu0 %v284, 64
    %v309 = vpop.permute.xlu0 %308
    %310 = vrot.lane.b32.xlu0 %v285, 64
    %v311 = vpop.permute.xlu0 %310
    %312 = vrot.lane.b32.xlu0 %v286, 64
    %v313 = vpop.permute.xlu0 %312
    %314 = vrot.lane.b32.xlu0 %v287, 64
    %v315 = vpop.permute.xlu0 %314
    %vm316 = vcmask 261120
    %v317 = vsel %vm316, %v301, 0
    %v319 = vsel %vm316, %v303, 0
    %v321 = vsel %vm316, %v305, 0
    %v323 = vsel %vm316, %v307, 0
    %v325 = vsel %vm316, %v309, 0
    %v327 = vsel %vm316, %v311, 0
    %v329 = vsel %vm316, %v313, 0
    %v331 = vsel %vm316, %v315, 0
    %333 = vmatprep.subr.mxu0 0.0
    %334 = vmatpush1.msra.mxu0 %v288
    %335 = vmatprep.subr.mxu0 0.0
    %336 = vmatpush1.msra.mxu0 %v289
    %337 = vmatprep.subr.mxu0 0.0
    %338 = vmatpush1.msra.mxu0 %v290
    %339 = vmatprep.subr.mxu0 0.0
    %340 = vmatpush1.msra.mxu0 %v291
    %341 = vmatprep.subr.mxu0 0.0
    %342 = vmatpush1.msra.mxu0 0.0
    %343 = vmatprep.subr.mxu0 0.0
    %344 = vmatpush1.msra.mxu0 0.0
    %345 = vmatprep.subr.mxu0 0.0
    %346 = vmatpush1.msra.mxu0 0.0
    %347 = vmatprep.subr.mxu0 0.0
    %348 = vmatpush1.msra.mxu0 0.0
    %349 = vmatprep.subr.mxu0 0.0
    %350 = vmatpush1.msra.mxu0 0.0
    %351 = vmatprep.subr.mxu0 0.0
    %352 = vmatpush1.msra.mxu0 0.0
    %353 = vmatprep.subr.mxu0 0.0
    %354 = vmatpush1.msra.mxu0 0.0
    %355 = vmatprep.subr.mxu0 0.0
    %356 = vmatpush1.msra.mxu0 0.0
    %357 = vmatprep.subr.mxu0 0.0
    %358 = vmatpush1.msra.mxu0 0.0
    %359 = vmatprep.subr.mxu0 0.0
    %360 = vmatpush1.msra.mxu0 0.0
    %361 = vmatprep.subr.mxu0 0.0
    %362 = vmatpush1.msra.mxu0 0.0
    %363 = vmatprep.subr.mxu0 0.0
    %364 = vmatpush1.msra.mxu0 0.0
    %365 = vmatprep.subr.mxu0 0.0
    %366 = vmatpush1.msra.mxu0 0.0
    %367 = vmatprep.subr.mxu0 0.0
    %368 = vmatpush1.msra.mxu0 0.0
    %369 = vmatprep.subr.mxu0 0.0
    %370 = vmatpush1.msra.mxu0 0.0
    %371 = vmatprep.subr.mxu0 0.0
    %372 = vmatpush1.msra.mxu0 0.0
    %373 = vmatprep.subr.mxu0 0.0
    %374 = vmatpush1.msra.mxu0 0.0
    %375 = vmatprep.subr.mxu0 0.0
    %376 = vmatpush1.msra.mxu0 0.0
    %377 = vmatprep.subr.mxu0 0.0
    %378 = vmatpush1.msra.mxu0 0.0
    %379 = vmatprep.subr.mxu0 0.0
    %380 = vmatpush1.msra.mxu0 0.0
    %381 = vmatprep.subr.mxu0 0.0
    %382 = vmatpush1.msra.mxu0 0.0
    %383 = vmatprep.subr.mxu0 0.0
    %384 = vmatpush1.msra.mxu0 0.0
    %385 = vmatprep.subr.mxu0 0.0
    %386 = vmatpush1.msra.mxu0 0.0
    %387 = vmatprep.subr.mxu0 0.0
    %388 = vmatpush1.msra.mxu0 0.0
    %389 = vmatprep.subr.mxu0 0.0
    %390 = vmatpush1.msra.mxu0 0.0
    %391 = vmatprep.subr.mxu0 0.0
    %392 = vmatpush1.msra.mxu0 0.0
    %393 = vmatprep.subr.mxu0 0.0
    %394 = vmatpush1.msra.mxu0 0.0
    %395 = vmatprep.subr.mxu0 0.0
    %396 = vmatpush1.msra.mxu0 0.0
    %397 = vmatprep.mubr.f32.mxu0 0.0
    %398 = vmatmul.mubr.f32.gmra.mrb[0].mxu0 %v317
    %v399 = vpop.f32.mrb[0].mxu0
    %v400 = vadd.f32 0.0, %v399
    %v401 = vpop.f32.mrb[0].mxu0
    %402 = vmatprep.mubr.f32.mxu0 0.0
    %403 = vmatmul.mubr.f32.gmra.mrb[0].mxu0 %v319
    %v404 = vpop.f32.mrb[0].mxu0
    %v405 = vadd.f32 0.0, %v404
    %v406 = vpop.f32.mrb[0].mxu0
    %407 = vmatprep.mubr.f32.mxu0 0.0
    %408 = vmatmul.mubr.f32.gmra.mrb[0].mxu0 %v321
    %v409 = vpop.f32.mrb[0].mxu0
    %v410 = vadd.f32 0.0, %v409
    %v411 = vpop.f32.mrb[0].mxu0
    %412 = vmatprep.mubr.f32.mxu0 0.0
    %413 = vmatmul.mubr.f32.gmra.mrb[0].mxu0 %v323
    %v414 = vpop.f32.mrb[0].mxu0
    %v415 = vadd.f32 0.0, %v414
    %v416 = vpop.f32.mrb[0].mxu0
    %417 = vmatprep.mubr.f32.mxu0 0.0
    %418 = vmatmul.mubr.f32.gmra.mrb[0].mxu0 %v325
    %v419 = vpop.f32.mrb[0].mxu0
    %v420 = vadd.f32 0.0, %v419
    %v421 = vpop.f32.mrb[0].mxu0
    %422 = vmatprep.mubr.f32.mxu0 0.0
    %423 = vmatmul.mubr.f32.gmra.mrb[0].mxu0 %v327
    %v424 = vpop.f32.mrb[0].mxu0
    %v425 = vadd.f32 0.0, %v424
    %v426 = vpop.f32.mrb[0].mxu0
    %427 = vmatprep.mubr.f32.mxu0 0.0
    %428 = vmatmul.mubr.f32.gmra.mrb[0].mxu0 %v329
    %v429 = vpop.f32.mrb[0].mxu0
    %v430 = vadd.f32 0.0, %v429
    %v431 = vpop.f32.mrb[0].mxu0
    %432 = vmatprep.mubr.f32.mxu0 0.0
    %433 = vmatmul.mubr.f32.gmra.mrb[0].mxu0 %v331
    %v434 = vpop.f32.mrb[0].mxu0
    %v435 = vadd.f32 0.0, %v434
    %v436 = vpop.f32.mrb[0].mxu0
    %437 = vdwg.mxu0
    %v438 = vmul.f32 %v400, %v400
    %v439 = vmul.f32 %v405, %v405
    %v440 = vmul.f32 %v410, %v410
    %v441 = vmul.f32 %v415, %v415
    %v442 = vmul.f32 %v420, %v420
    %v443 = vmul.f32 %v425, %v425
    %v444 = vmul.f32 %v430, %v430
    %v445 = vmul.f32 %v435, %v435
    %v446 = vadd.f32 %v438, %v442
    %v447 = vadd.f32 %v439, %v443
    %v448 = vadd.f32 %v440, %v444
    %v449 = vadd.f32 %v441, %v445
    %v450 = vmax.f32 %v446, 1e-30
    %v451 = vmax.f32 %v447, 1e-30
    %v452 = vmax.f32 %v448, 1e-30
    %v453 = vmax.f32 %v449, 1e-30
    %v454 = vrsqrt.pop %v450
    %v455 = vrsqrt.pop %v451
    %v456 = vrsqrt.pop %v452
    %v457 = vrsqrt.pop %v453
    %vm458 = vcmp.gt.f32.partialorder %v446, 0.0
    %vm459 = vcmp.gt.f32.partialorder %v447, 0.0
    %vm460 = vcmp.gt.f32.partialorder %v448, 0.0
    %vm461 = vcmp.gt.f32.partialorder %v449, 0.0
    %v462 = vmul.f32 %v400, %v454
    %v463 = vmul.f32 %v405, %v455
    %v464 = vmul.f32 %v410, %v456
    %v465 = vmul.f32 %v415, %v457
    %v466 = vsel %vm458, %v462, 1.0
    %v467 = vsel %vm459, %v463, 1.0
    %v468 = vsel %vm460, %v464, 1.0
    %v469 = vsel %vm461, %v465, 1.0
    %v470 = vmul.f32 %v466, 10.0
    %v471 = vmul.f32 %v467, 10.0
    %v472 = vmul.f32 %v468, 10.0
    %v473 = vmul.f32 %v469, 10.0
    %v474 = vmul.f32 %v470, 1.442695
    %v475 = vpow.pop %v474
    %v476 = vmul.f32 %v471, 1.442695
    %v477 = vpow.pop %v476
    %v478 = vmul.f32 %v472, 1.442695
    %v479 = vpow.pop %v478
    %v480 = vmul.f32 %v473, 1.442695
    %v481 = vpow.pop %v480
    %v482 = vlaneseq
    %v483 = vshrl.u32 %v482, 7
    %v484 = vadd.s32 %v483, 8
    %vm485 = vcmp.lt.s32.totalorder %v483, 9
    %vm486 = vcmp.lt.s32.totalorder %v484, 9
    %v487 = vsel %vm485, 1, 0
    %v488 = vsel %vm486, 1, 0
    %vm489 = vcmp.eq.s32.totalorder %v487, 1
    %vm490 = vcmp.eq.s32.totalorder %v488, 1
    %v491 = vsel %vm489, %v475, 0.0
    %v492 = vsel %vm490, %v477, 0.0
    %v493 = vsel %vm489, %v479, 0.0
    %v494 = vsel %vm490, %v481, 0.0
    %vm495 = vcmask 31744
    %v496 = vsel %vm495, %v491, 0.0
    %v497 = vsel %vm495, %v492, 0.0
    %v498 = vadd.f32 %v496, %v497
    %v499 = vrot.slane %v498, 4
    %v500 = vadd.f32 %v498, %v499
    %v501 = vrot.slane %v500, 2
    %v502 = vadd.f32 %v500, %v501
    %v503 = vrot.slane %v502, 1
    %v504 = vadd.f32 %v502, %v503
    %v505 = vsel %vm495, %v493, 0.0
    %v506 = vsel %vm495, %v494, 0.0
    %v507 = vadd.f32 %v505, %v506
    %v508 = vrot.slane %v507, 4
    %v509 = vadd.f32 %v507, %v508
    %v510 = vrot.slane %v509, 2
    %v511 = vadd.f32 %v509, %v510
    %v512 = vrot.slane %v511, 1
    %v513 = vadd.f32 %v511, %v512
    %v514 = vrcp.pop %v504
    %v515 = vrcp.pop %v513
    %v516 = vmul.f32 %v491, %v514
    %v517 = vmul.f32 %v492, %v514
    %v518 = vmul.f32 %v493, %v515
    %v519 = vmul.f32 %v494, %v515
    %v520 = vld [vmem:[%s8] sm:$0xf]
    %v522 = vsel %vm495, %v516, 0
    %v525 = vsel %vm495, %v517, 0
    %v528 = vsel %vm495, %v518, 0
    %v531 = vsel %vm495, %v519, 0
    %vm533 = vcmask 1043456
    %v535 = vsel %vm533, %v520, 0
    %537 = vmatprep.subr.mxu0 0.0
    %538 = vmatpush1.msra.mxu0 %v535
    %539 = vmatprep.subr.mxu0 0.0
    %540 = vmatpush1.msra.mxu0 0.0
    %541 = vmatprep.subr.mxu0 0.0
    %542 = vmatpush1.msra.mxu0 0.0
    %543 = vmatprep.subr.mxu0 0.0
    %544 = vmatpush1.msra.mxu0 0.0
    %545 = vmatprep.subr.mxu0 0.0
    %546 = vmatpush1.msra.mxu0 0.0
    %547 = vmatprep.subr.mxu0 0.0
    %548 = vmatpush1.msra.mxu0 0.0
    %549 = vmatprep.subr.mxu0 0.0
    %550 = vmatpush1.msra.mxu0 0.0
    %551 = vmatprep.subr.mxu0 0.0
    %552 = vmatpush1.msra.mxu0 0.0
    %553 = vmatprep.subr.mxu0 0.0
    %554 = vmatpush1.msra.mxu0 0.0
    %555 = vmatprep.subr.mxu0 0.0
    %556 = vmatpush1.msra.mxu0 0.0
    %557 = vmatprep.subr.mxu0 0.0
    %558 = vmatpush1.msra.mxu0 0.0
    %559 = vmatprep.subr.mxu0 0.0
    %560 = vmatpush1.msra.mxu0 0.0
    %561 = vmatprep.subr.mxu0 0.0
    %562 = vmatpush1.msra.mxu0 0.0
    %563 = vmatprep.subr.mxu0 0.0
    %564 = vmatpush1.msra.mxu0 0.0
    %565 = vmatprep.subr.mxu0 0.0
    %566 = vmatpush1.msra.mxu0 0.0
    %567 = vmatprep.subr.mxu0 0.0
    %568 = vmatpush1.msra.mxu0 0.0
    %569 = vmatprep.subr.mxu0 0.0
    %570 = vmatpush1.msra.mxu0 0.0
    %571 = vmatprep.subr.mxu0 0.0
    %572 = vmatpush1.msra.mxu0 0.0
    %573 = vmatprep.subr.mxu0 0.0
    %574 = vmatpush1.msra.mxu0 0.0
    %575 = vmatprep.subr.mxu0 0.0
    %576 = vmatpush1.msra.mxu0 0.0
    %577 = vmatprep.subr.mxu0 0.0
    %578 = vmatpush1.msra.mxu0 0.0
    %579 = vmatprep.subr.mxu0 0.0
    %580 = vmatpush1.msra.mxu0 0.0
    %581 = vmatprep.subr.mxu0 0.0
    %582 = vmatpush1.msra.mxu0 0.0
    %583 = vmatprep.subr.mxu0 0.0
    %584 = vmatpush1.msra.mxu0 0.0
    %585 = vmatprep.subr.mxu0 0.0
    %586 = vmatpush1.msra.mxu0 0.0
    %587 = vmatprep.subr.mxu0 0.0
    %588 = vmatpush1.msra.mxu0 0.0
    %589 = vmatprep.subr.mxu0 0.0
    %590 = vmatpush1.msra.mxu0 0.0
    %591 = vmatprep.subr.mxu0 0.0
    %592 = vmatpush1.msra.mxu0 0.0
    %593 = vmatprep.subr.mxu0 0.0
    %594 = vmatpush1.msra.mxu0 0.0
    %595 = vmatprep.subr.mxu0 0.0
    %596 = vmatpush1.msra.mxu0 0.0
    %597 = vmatprep.subr.mxu0 0.0
    %598 = vmatpush1.msra.mxu0 0.0
    %599 = vmatprep.subr.mxu0 0.0
    %600 = vmatpush1.msra.mxu0 0.0
    %601 = vmatprep.mubr.f32.mxu0 0.0
    %602 = vmatmul.mubr.f32.gmra.mrb[0].mxu0 %v522
    %v603 = vpop.f32.mrb[0].mxu0
    %v604 = vadd.f32 0.0, %v603
    %v605 = vpop.f32.mrb[0].mxu0
    %606 = vmatprep.mubr.f32.mxu0 0.0
    %607 = vmatmul.mubr.f32.gmra.mrb[0].mxu0 %v525
    %v608 = vpop.f32.mrb[0].mxu0
    %v609 = vadd.f32 0.0, %v608
    %v610 = vpop.f32.mrb[0].mxu0
    %611 = vmatprep.mubr.f32.mxu0 0.0
    %612 = vmatmul.mubr.f32.gmra.mrb[0].mxu0 %v528
    %v613 = vpop.f32.mrb[0].mxu0
    %v614 = vadd.f32 0.0, %v613
    %v615 = vpop.f32.mrb[0].mxu0
    %616 = vmatprep.mubr.f32.mxu0 0.0
    %617 = vmatmul.mubr.f32.gmra.mrb[0].mxu0 %v531
    %v618 = vpop.f32.mrb[0].mxu0
    %v619 = vadd.f32 0.0, %v618
    %v620 = vpop.f32.mrb[0].mxu0
    %621 = vdwg.mxu0
    %v622 = vmul.f32 %v604, %v188
    %v623 = vmul.f32 %v609, %v194
    %v624 = vmul.f32 %v614, %v200
    %v625 = vmul.f32 %v619, %v206
    %v626 = vsel %vm106, %v622, 0.0
    %v627 = vsel %vm106, %v623, 0.0
    %v628 = vadd.f32 %v626, %v627
    %v629 = vrot.slane %v628, 4
    %v630 = vadd.f32 %v628, %v629
    %v631 = vrot.slane %v630, 2
    %v632 = vadd.f32 %v630, %v631
    %v633 = vrot.slane %v632, 1
    %v634 = vadd.f32 %v632, %v633
    %v635 = vsel %vm106, %v624, 0.0
    %v636 = vsel %vm106, %v625, 0.0
    %v637 = vadd.f32 %v635, %v636
    %v638 = vrot.slane %v637, 4
    %v639 = vadd.f32 %v637, %v638
    %v640 = vrot.slane %v639, 2
    %v641 = vadd.f32 %v639, %v640
    %v642 = vrot.slane %v641, 1
    %v643 = vadd.f32 %v641, %v642
    %v644 = vld [vmem:[#allocation5] sm:$0xff]
    %v645 = vld [vmem:[#allocation5 + $0x8] sm:$0xff]
    %v646 = vld [vmem:[#allocation5 + $0x10] sm:$0xff]
    %v647 = vld [vmem:[#allocation5 + $0x18] sm:$0xff]
    %v648 = vld [vmem:[#allocation5 + $0x20] sm:$0xff]
    %v649 = vld [vmem:[#allocation5 + $0x28] sm:$0xff]
    %v650 = vld [vmem:[#allocation5 + $0x30] sm:$0xff]
    %v651 = vld [vmem:[#allocation5 + $0x38] sm:$0xff]
    %v652 = vld [vmem:[%s4] sm:$0x1]
    %v654 = vlaneseq
    %v655 = vshrl.u32 %v654, 7
    %v656 = vsub.s32 0, %v655
    %v657 = vrot.slane %v652, %v656
    %vm661 = vcmask 1041409
    %v662 = vsel %vm661, %v643, %v634
    %v663 = vsel %vm106, %v662, 0
    %665 = vmatprep.subr.mxu0 0.0
    %666 = vmatpush1.msra.mxu0 %v644
    %667 = vmatprep.subr.mxu0 0.0
    %668 = vmatpush1.msra.mxu0 %v645
    %669 = vmatprep.subr.mxu0 0.0
    %670 = vmatpush1.msra.mxu0 %v646
    %671 = vmatprep.subr.mxu0 0.0
    %672 = vmatpush1.msra.mxu0 %v647
    %673 = vmatprep.subr.mxu0 0.0
    %674 = vmatpush1.msra.mxu0 %v648
    %675 = vmatprep.subr.mxu0 0.0
    %676 = vmatpush1.msra.mxu0 %v649
    %677 = vmatprep.subr.mxu0 0.0
    %678 = vmatpush1.msra.mxu0 %v650
    %679 = vmatprep.subr.mxu0 0.0
    %680 = vmatpush1.msra.mxu0 %v651
    %681 = vmatprep.subr.mxu0 0.0
    %682 = vmatpush1.msra.mxu0 0.0
    %683 = vmatprep.subr.mxu0 0.0
    %684 = vmatpush1.msra.mxu0 0.0
    %685 = vmatprep.subr.mxu0 0.0
    %686 = vmatpush1.msra.mxu0 0.0
    %687 = vmatprep.subr.mxu0 0.0
    %688 = vmatpush1.msra.mxu0 0.0
    %689 = vmatprep.subr.mxu0 0.0
    %690 = vmatpush1.msra.mxu0 0.0
    %691 = vmatprep.subr.mxu0 0.0
    %692 = vmatpush1.msra.mxu0 0.0
    %693 = vmatprep.subr.mxu0 0.0
    %694 = vmatpush1.msra.mxu0 0.0
    %695 = vmatprep.subr.mxu0 0.0
    %696 = vmatpush1.msra.mxu0 0.0
    %697 = vmatprep.subr.mxu0 0.0
    %698 = vmatpush1.msra.mxu0 0.0
    %699 = vmatprep.subr.mxu0 0.0
    %700 = vmatpush1.msra.mxu0 0.0
    %701 = vmatprep.subr.mxu0 0.0
    %702 = vmatpush1.msra.mxu0 0.0
    %703 = vmatprep.subr.mxu0 0.0
    %704 = vmatpush1.msra.mxu0 0.0
    %705 = vmatprep.subr.mxu0 0.0
    %706 = vmatpush1.msra.mxu0 0.0
    %707 = vmatprep.subr.mxu0 0.0
    %708 = vmatpush1.msra.mxu0 0.0
    %709 = vmatprep.subr.mxu0 0.0
    %710 = vmatpush1.msra.mxu0 0.0
    %711 = vmatprep.subr.mxu0 0.0
    %712 = vmatpush1.msra.mxu0 0.0
    %713 = vmatprep.subr.mxu0 0.0
    %714 = vmatpush1.msra.mxu0 0.0
    %715 = vmatprep.subr.mxu0 0.0
    %716 = vmatpush1.msra.mxu0 0.0
    %717 = vmatprep.subr.mxu0 0.0
    %718 = vmatpush1.msra.mxu0 0.0
    %719 = vmatprep.subr.mxu0 0.0
    %720 = vmatpush1.msra.mxu0 0.0
    %721 = vmatprep.subr.mxu0 0.0
    %722 = vmatpush1.msra.mxu0 0.0
    %723 = vmatprep.subr.mxu0 0.0
    %724 = vmatpush1.msra.mxu0 0.0
    %725 = vmatprep.subr.mxu0 0.0
    %726 = vmatpush1.msra.mxu0 0.0
    %727 = vmatprep.subr.mxu0 0.0
    %728 = vmatpush1.msra.mxu0 0.0
    %729 = vmatprep.mubr.f32.mxu0 0.0
    %730 = vmatmul.mubr.f32.gmra.mrb[0].mxu0 %v663
    %v731 = vpop.f32.mrb[0].mxu0
    %v732 = vadd.f32 %v657, %v731
    %v733 = vpop.f32.mrb[0].mxu0
    %734 = vdwg.mxu0
    %v735 = vld [vmem:[#allocation7] sm:$0xff]
    %v736 = vld [vmem:[#allocation7 + $0x8] sm:$0xff]
    %v737 = vld [vmem:[#allocation7 + $0x10] sm:$0xff]
    %v738 = vld [vmem:[#allocation7 + $0x18] sm:$0xff]
    %v739 = vld [vmem:[#allocation7 + $0x20] sm:$0xff]
    %v740 = vld [vmem:[#allocation7 + $0x28] sm:$0xff]
    %v741 = vld [vmem:[#allocation7 + $0x30] sm:$0xff]
    %v742 = vld [vmem:[#allocation7 + $0x38] sm:$0xff]
    %v743 = vld [vmem:[%s6] sm:$0x1]
    %v745 = vlaneseq
    %v746 = vshrl.u32 %v745, 7
    %v747 = vsub.s32 0, %v746
    %v748 = vrot.slane %v743, %v747
    %v751 = vsel %vm106, %v732, 0
    %753 = vmatprep.subr.mxu0 0.0
    %754 = vmatpush1.msra.mxu0 %v735
    %755 = vmatprep.subr.mxu0 0.0
    %756 = vmatpush1.msra.mxu0 %v736
    %757 = vmatprep.subr.mxu0 0.0
    %758 = vmatpush1.msra.mxu0 %v737
    %759 = vmatprep.subr.mxu0 0.0
    %760 = vmatpush1.msra.mxu0 %v738
    %761 = vmatprep.subr.mxu0 0.0
    %762 = vmatpush1.msra.mxu0 %v739
    %763 = vmatprep.subr.mxu0 0.0
    %764 = vmatpush1.msra.mxu0 %v740
    %765 = vmatprep.subr.mxu0 0.0
    %766 = vmatpush1.msra.mxu0 %v741
    %767 = vmatprep.subr.mxu0 0.0
    %768 = vmatpush1.msra.mxu0 %v742
    %769 = vmatprep.subr.mxu0 0.0
    %770 = vmatpush1.msra.mxu0 0.0
    %771 = vmatprep.subr.mxu0 0.0
    %772 = vmatpush1.msra.mxu0 0.0
    %773 = vmatprep.subr.mxu0 0.0
    %774 = vmatpush1.msra.mxu0 0.0
    %775 = vmatprep.subr.mxu0 0.0
    %776 = vmatpush1.msra.mxu0 0.0
    %777 = vmatprep.subr.mxu0 0.0
    %778 = vmatpush1.msra.mxu0 0.0
    %779 = vmatprep.subr.mxu0 0.0
    %780 = vmatpush1.msra.mxu0 0.0
    %781 = vmatprep.subr.mxu0 0.0
    %782 = vmatpush1.msra.mxu0 0.0
    %783 = vmatprep.subr.mxu0 0.0
    %784 = vmatpush1.msra.mxu0 0.0
    %785 = vmatprep.subr.mxu0 0.0
    %786 = vmatpush1.msra.mxu0 0.0
    %787 = vmatprep.subr.mxu0 0.0
    %788 = vmatpush1.msra.mxu0 0.0
    %789 = vmatprep.subr.mxu0 0.0
    %790 = vmatpush1.msra.mxu0 0.0
    %791 = vmatprep.subr.mxu0 0.0
    %792 = vmatpush1.msra.mxu0 0.0
    %793 = vmatprep.subr.mxu0 0.0
    %794 = vmatpush1.msra.mxu0 0.0
    %795 = vmatprep.subr.mxu0 0.0
    %796 = vmatpush1.msra.mxu0 0.0
    %797 = vmatprep.subr.mxu0 0.0
    %798 = vmatpush1.msra.mxu0 0.0
    %799 = vmatprep.subr.mxu0 0.0
    %800 = vmatpush1.msra.mxu0 0.0
    %801 = vmatprep.subr.mxu0 0.0
    %802 = vmatpush1.msra.mxu0 0.0
    %803 = vmatprep.subr.mxu0 0.0
    %804 = vmatpush1.msra.mxu0 0.0
    %805 = vmatprep.subr.mxu0 0.0
    %806 = vmatpush1.msra.mxu0 0.0
    %807 = vmatprep.subr.mxu0 0.0
    %808 = vmatpush1.msra.mxu0 0.0
    %809 = vmatprep.subr.mxu0 0.0
    %810 = vmatpush1.msra.mxu0 0.0
    %811 = vmatprep.subr.mxu0 0.0
    %812 = vmatpush1.msra.mxu0 0.0
    %813 = vmatprep.subr.mxu0 0.0
    %814 = vmatpush1.msra.mxu0 0.0
    %815 = vmatprep.subr.mxu0 0.0
    %816 = vmatpush1.msra.mxu0 0.0
    %817 = vmatprep.mubr.f32.mxu0 0.0
    %818 = vmatmul.mubr.f32.gmra.mrb[0].mxu0 %v751
    %v819 = vpop.f32.mrb[0].mxu0
    %v820 = vadd.f32 %v748, %v819
    %v821 = vpop.f32.mrb[0].mxu0
    %822 = vdwg.mxu0
    %v823 = vlaneseq
    %v824 = vand.u32 %v823, 127
    %vm825 = vcmp.lt.s32.totalorder %v824, 32
    %v826 = vsel %vm825, 1.0, -1.0
    %vm827 = vcmask 1048064
    %828 = vrot.lane.b32.xlu0 %v820, 64
    %v829 = vpop.permute.xlu0 %828
    %v830 = vsel %vm827, %v829, %v820
    %831 = vrot.lane.b32.xlu0 %v830, 64
    %v832 = vpop.permute.xlu0 %831
    %v833 = vsel %vm827, %v832, %v820
    %835 = vrot.lane.b32.xlu0 %v826, 32
    %v836 = vpop.permute.xlu0 %835
    %v838 = vmul.f32 %v833, %v836
    %v841 = vunpack.c.l.s4 1966171168
    %v842 = vunpack.c.0.s8 %v841
    %v843 = vlaneseq
    %v844 = vshrl.u32 %v843, 7
    %v845 = vsub.s32 %v842, %v844
    %v846 = vrot.slane %v820, %v845
    %v847 = vcombine.high %v846, %v846
    %v849 = vunpack.c.l.s4 1966171168
    %v850 = vunpack.c.0.s8 %v849
    %v851 = vlaneseq
    %v852 = vshrl.u32 %v851, 7
    %v853 = vsub.s32 %v850, %v852
    %v854 = vrot.slane %v846, %v853
    %v856 = vunpack.c.l.s4 1966171168
    %v857 = vunpack.c.0.s8 %v856
    %v858 = vlaneseq
    %v859 = vshrl.u32 %v858, 7
    %v860 = vsub.s32 %v857, %v859
    %v861 = vrot.slane %v847, %v860
    %v866 = vunpack.c.l.s4 1966171168
    %v867 = vunpack.c.0.s8 %v866
    %v868 = vlaneseq
    %v869 = vshrl.u32 %v868, 7
    %v870 = vsub.s32 %v867, %v869
    %v871 = vrot.slane %v838, %v870
    %v872 = vcombine.high %v871, %v871
    %v874 = vunpack.c.l.s4 1966171168
    %v875 = vunpack.c.0.s8 %v874
    %v876 = vlaneseq
    %v877 = vshrl.u32 %v876, 7
    %v878 = vsub.s32 %v875, %v877
    %v879 = vrot.slane %v871, %v878
    %v881 = vunpack.c.l.s4 1966171168
    %v882 = vunpack.c.0.s8 %v881
    %v883 = vlaneseq
    %v884 = vshrl.u32 %v883, 7
    %v885 = vsub.s32 %v882, %v884
    %v886 = vrot.slane %v872, %v885
    %v887 = vlaneseq
    %v888 = vshrl.u32 %v887, 7
    %v889 = vsub.s32 0, %v888
    %v890 = vrot.slane %v879, %v889
    %v891 = vlaneseq
    %v892 = vshrl.u32 %v891, 7
    %v893 = vsub.s32 0, %v892
    %v894 = vrot.slane %v886, %v893
    %895 = vrot.lane.b32.xlu0 %v890, 96
    %v896 = vpop.permute.xlu0 %895
    %897 = vrot.lane.b32.xlu0 %v894, 96
    %v898 = vpop.permute.xlu0 %897
    %vm901 = vcmask 1040384
    %v902 = vsel %vm901, %v854, %v896
    %v903 = vsel %vm901, %v861, %v898
    %905 = vrot.lane.b32.xlu0 %v188, 64
    %v906 = vpop.permute.xlu0 %905
    %v908 = vsel %vm106, %v902, 0
    %v910 = vsel %vm106, %v906, 0
    %912 = vmatprep.subr.mxu0 0.0
    %913 = vmatpush1.xpose.msra.mxu0 %v910
    %914 = vmatprep.subr.mxu0 0.0
    %915 = vmatpush1.xpose.msra.mxu0 0.0
    %916 = vmatprep.subr.mxu0 0.0
    %917 = vmatpush1.xpose.msra.mxu0 0.0
    %918 = vmatprep.subr.mxu0 0.0
    %919 = vmatpush1.xpose.msra.mxu0 0.0
    %920 = vmatprep.subr.mxu0 0.0
    %921 = vmatpush1.xpose.msra.mxu0 0.0
    %922 = vmatprep.subr.mxu0 0.0
    %923 = vmatpush1.xpose.msra.mxu0 0.0
    %924 = vmatprep.subr.mxu0 0.0
    %925 = vmatpush1.xpose.msra.mxu0 0.0
    %926 = vmatprep.subr.mxu0 0.0
    %927 = vmatpush1.xpose.msra.mxu0 0.0
    %928 = vmatprep.subr.mxu0 0.0
    %929 = vmatpush1.xpose.msra.mxu0 0.0
    %930 = vmatprep.subr.mxu0 0.0
    %931 = vmatpush1.xpose.msra.mxu0 0.0
    %932 = vmatprep.subr.mxu0 0.0
    %933 = vmatpush1.xpose.msra.mxu0 0.0
    %934 = vmatprep.subr.mxu0 0.0
    %935 = vmatpush1.xpose.msra.mxu0 0.0
    %936 = vmatprep.subr.mxu0 0.0
    %937 = vmatpush1.xpose.msra.mxu0 0.0
    %938 = vmatprep.subr.mxu0 0.0
    %939 = vmatpush1.xpose.msra.mxu0 0.0
    %940 = vmatprep.subr.mxu0 0.0
    %941 = vmatpush1.xpose.msra.mxu0 0.0
    %942 = vmatprep.subr.mxu0 0.0
    %943 = vmatpush1.xpose.msra.mxu0 0.0
    %944 = vmatprep.subr.mxu0 0.0
    %945 = vmatpush1.xpose.msra.mxu0 0.0
    %946 = vmatprep.subr.mxu0 0.0
    %947 = vmatpush1.xpose.msra.mxu0 0.0
    %948 = vmatprep.subr.mxu0 0.0
    %949 = vmatpush1.xpose.msra.mxu0 0.0
    %950 = vmatprep.subr.mxu0 0.0
    %951 = vmatpush1.xpose.msra.mxu0 0.0
    %952 = vmatprep.subr.mxu0 0.0
    %953 = vmatpush1.xpose.msra.mxu0 0.0
    %954 = vmatprep.subr.mxu0 0.0
    %955 = vmatpush1.xpose.msra.mxu0 0.0
    %956 = vmatprep.subr.mxu0 0.0
    %957 = vmatpush1.xpose.msra.mxu0 0.0
    %958 = vmatprep.subr.mxu0 0.0
    %959 = vmatpush1.xpose.msra.mxu0 0.0
    %960 = vmatprep.subr.mxu0 0.0
    %961 = vmatpush1.xpose.msra.mxu0 0.0
    %962 = vmatprep.subr.mxu0 0.0
    %963 = vmatpush1.xpose.msra.mxu0 0.0
    %964 = vmatprep.subr.mxu0 0.0
    %965 = vmatpush1.xpose.msra.mxu0 0.0
    %966 = vmatprep.subr.mxu0 0.0
    %967 = vmatpush1.xpose.msra.mxu0 0.0
    %968 = vmatprep.subr.mxu0 0.0
    %969 = vmatpush1.xpose.msra.mxu0 0.0
    %970 = vmatprep.subr.mxu0 0.0
    %971 = vmatpush1.xpose.msra.mxu0 0.0
    %972 = vmatprep.subr.mxu0 0.0
    %973 = vmatpush1.xpose.msra.mxu0 0.0
    %974 = vmatprep.subr.mxu0 0.0
    %975 = vmatpush1.xpose.msra.mxu0 0.0
    %976 = vmatprep.mubr.f32.mxu0 0.0
    %977 = vmatmul.mubr.f32.gmra.mrb[0].mxu0 %v908
    %v978 = vpop.f32.mrb[0].mxu0
    %v979 = vadd.f32 0.0, %v978
    %v980 = vpop.f32.mrb[0].mxu0
    %981 = vdwg.mxu0
    %983 = vrot.lane.b32.xlu0 %v200, 64
    %v984 = vpop.permute.xlu0 %983
    %v986 = vsel %vm106, %v903, 0
    %v988 = vsel %vm106, %v984, 0
    %990 = vmatprep.subr.mxu0 0.0
    %991 = vmatpush1.xpose.msra.mxu0 %v988
    %992 = vmatprep.subr.mxu0 0.0
    %993 = vmatpush1.xpose.msra.mxu0 0.0
    %994 = vmatprep.subr.mxu0 0.0
    %995 = vmatpush1.xpose.msra.mxu0 0.0
    %996 = vmatprep.subr.mxu0 0.0
    %997 = vmatpush1.xpose.msra.mxu0 0.0
    %998 = vmatprep.subr.mxu0 0.0
    %999 = vmatpush1.xpose.msra.mxu0 0.0
    %1000 = vmatprep.subr.mxu0 0.0
    %1001 = vmatpush1.xpose.msra.mxu0 0.0
    %1002 = vmatprep.subr.mxu0 0.0
    %1003 = vmatpush1.xpose.msra.mxu0 0.0
    %1004 = vmatprep.subr.mxu0 0.0
    %1005 = vmatpush1.xpose.msra.mxu0 0.0
    %1006 = vmatprep.subr.mxu0 0.0
    %1007 = vmatpush1.xpose.msra.mxu0 0.0
    %1008 = vmatprep.subr.mxu0 0.0
    %1009 = vmatpush1.xpose.msra.mxu0 0.0
    %1010 = vmatprep.subr.mxu0 0.0
    %1011 = vmatpush1.xpose.msra.mxu0 0.0
    %1012 = vmatprep.subr.mxu0 0.0
    %1013 = vmatpush1.xpose.msra.mxu0 0.0
    %1014 = vmatprep.subr.mxu0 0.0
    %1015 = vmatpush1.xpose.msra.mxu0 0.0
    %1016 = vmatprep.subr.mxu0 0.0
    %1017 = vmatpush1.xpose.msra.mxu0 0.0
    %1018 = vmatprep.subr.mxu0 0.0
    %1019 = vmatpush1.xpose.msra.mxu0 0.0
    %1020 = vmatprep.subr.mxu0 0.0
    %1021 = vmatpush1.xpose.msra.mxu0 0.0
    %1022 = vmatprep.subr.mxu0 0.0
    %1023 = vmatpush1.xpose.msra.mxu0 0.0
    %1024 = vmatprep.subr.mxu0 0.0
    %1025 = vmatpush1.xpose.msra.mxu0 0.0
    %1026 = vmatprep.subr.mxu0 0.0
    %1027 = vmatpush1.xpose.msra.mxu0 0.0
    %1028 = vmatprep.subr.mxu0 0.0
    %1029 = vmatpush1.xpose.msra.mxu0 0.0
    %1030 = vmatprep.subr.mxu0 0.0
    %1031 = vmatpush1.xpose.msra.mxu0 0.0
    %1032 = vmatprep.subr.mxu0 0.0
    %1033 = vmatpush1.xpose.msra.mxu0 0.0
    %1034 = vmatprep.subr.mxu0 0.0
    %1035 = vmatpush1.xpose.msra.mxu0 0.0
    %1036 = vmatprep.subr.mxu0 0.0
    %1037 = vmatpush1.xpose.msra.mxu0 0.0
    %1038 = vmatprep.subr.mxu0 0.0
    %1039 = vmatpush1.xpose.msra.mxu0 0.0
    %1040 = vmatprep.subr.mxu0 0.0
    %1041 = vmatpush1.xpose.msra.mxu0 0.0
    %1042 = vmatprep.subr.mxu0 0.0
    %1043 = vmatpush1.xpose.msra.mxu0 0.0
    %1044 = vmatprep.subr.mxu0 0.0
    %1045 = vmatpush1.xpose.msra.mxu0 0.0
    %1046 = vmatprep.subr.mxu0 0.0
    %1047 = vmatpush1.xpose.msra.mxu0 0.0
    %1048 = vmatprep.subr.mxu0 0.0
    %1049 = vmatpush1.xpose.msra.mxu0 0.0
    %1050 = vmatprep.subr.mxu0 0.0
    %1051 = vmatpush1.xpose.msra.mxu0 0.0
    %1052 = vmatprep.subr.mxu0 0.0
    %1053 = vmatpush1.xpose.msra.mxu0 0.0
    %1054 = vmatprep.mubr.f32.mxu0 0.0
    %1055 = vmatmul.mubr.f32.gmra.mrb[0].mxu0 %v986
    %v1056 = vpop.f32.mrb[0].mxu0
    %v1057 = vadd.f32 0.0, %v1056
    %v1058 = vpop.f32.mrb[0].mxu0
    %1059 = vdwg.mxu0
    %v1060 = vmul.f32 %v979, %v979
    %v1061 = vmul.f32 %v1057, %v1057
    %vm1062 = vcmask 58368
    %v1063 = vsel %vm1062, %v1060, 0.0
    %v1064 = vrot.slane %v1063, 4
    %v1065 = vadd.f32 %v1063, %v1064
    %v1066 = vrot.slane %v1065, 2
    %v1067 = vadd.f32 %v1065, %v1066
    %v1068 = vrot.slane %v1067, 1
    %v1069 = vadd.f32 %v1067, %v1068
    %v1070 = vsel %vm1062, %v1061, 0.0
    %v1071 = vrot.slane %v1070, 4
    %v1072 = vadd.f32 %v1070, %v1071
    %v1073 = vrot.slane %v1072, 2
    %v1074 = vadd.f32 %v1072, %v1073
    %v1075 = vrot.slane %v1074, 1
    %v1076 = vadd.f32 %v1074, %v1075
    %v1077 = vmax.f32 %v1069, 1e-30
    %v1078 = vmax.f32 %v1076, 1e-30
    %v1079 = vrsqrt.pop %v1077
    %v1080 = vrsqrt.pop %v1078
    %v1081 = vmul.f32 %v1069, 0.17677669
    %v1082 = vmul.f32 %v1076, 0.17677669
    %v1083 = vmul.f32 %v1081, %v1079
    %v1084 = vmul.f32 %v1082, %v1080
    %v1085 = vtanh.pop %v1083
    %v1086 = vtanh.pop %v1084
    %v1087 = vmul.f32 %v1085, 10.0
    %v1088 = vmul.f32 %v1086, 10.0
    %v1089 = vmul.f32 %v1087, %v1079
    %v1090 = vmul.f32 %v1088, %v1080
    %vm1091 = vcmp.eq.s32.totalorder %v483, 0
    %v1092 = vsel %vm1091, 1.0, -1.0
    %v1093 = vmul.f32 %v1089, %v979
    %v1094 = vmul.f32 %v1090, %v1057
    %v1095 = vmul.f32 %v1093, %v1092
    %v1096 = vmul.f32 %v1094, %v1092
    %v1097 = vsub.f32 0.0, %v1095
    %v1098 = vsub.f32 0.0, %v1096
    %v1099 = vmul.f32 %v1097, 1.442695
    %v1100 = vpow.pop %v1099
    %v1101 = vmul.f32 %v1098, 1.442695
    %v1102 = vpow.pop %v1101
    %v1103 = vadd.f32 %v1100, 1.0
    %v1104 = vadd.f32 %v1102, 1.0
    %v1105 = vrcp.pop %v1103
    %v1106 = vrcp.pop %v1104
    %v1107 = vmul.f32 %v1105, %v1105
    %v1108 = vmul.f32 %v1106, %v1106
    %v1109 = vsel %vm1062, %v1107, 0.0
    %v1110 = vrot.slane %v1109, 4
    %v1111 = vadd.f32 %v1109, %v1110
    %v1112 = vrot.slane %v1111, 2
    %v1113 = vadd.f32 %v1111, %v1112
    %v1114 = vrot.slane %v1113, 1
    %v1115 = vadd.f32 %v1113, %v1114
    %v1116 = vsel %vm1062, %v1108, 0.0
    %v1117 = vrot.slane %v1116, 4
    %v1118 = vadd.f32 %v1116, %v1117
    %v1119 = vrot.slane %v1118, 2
    %v1120 = vadd.f32 %v1118, %v1119
    %v1121 = vrot.slane %v1120, 1
    %v1122 = vadd.f32 %v1120, %v1121
    %v1123 = vmax.f32 %v1115, 0.0
    %v1124 = vmax.f32 %v1122, 0.0
    %v1125 = vmin.f32 %v1123, 1.0
    %v1126 = vmin.f32 %v1124, 1.0
    %1128 = vrot.lane.b32.xlu0 %v1126, 8
    %v1129 = vpop.permute.xlu0 %1128
    %vm1131 = vcmask 64512
    %v1132 = vsel %vm1131, %v1125, %v1129
    %vm1133 = vcmask 122880
    %1134 = vst.msk [vmem:[#allocation8] sm:$0x1] %vm1133, %v1132
    // Predicated region
    $region50: #{tpu_custom_call.1} parent=1 // pred_check
      _
    $region51: #{tpu_custom_call.1} parent=1 // pred_check_branch
      %1136 = sbr.rel (0) target = $region53
    $region52: #{tpu_custom_call.1} parent=1 // pred_region
      %s1138 = ssub.s32 16, 16
      %1139 = vsyncadd [#allocation4], %s1138
      %s1141 = sshll.u32 [#allocation8], 4
      %s1142 = int_to_ptr.vmem [resolvable:$true] %s1141
      %1144 = dma.vmem_to_hbm [thread:$0]  %s1142, 16, %s9, [#allocation4]
    $region53: #{tpu_custom_call.1} parent=1 // pred_fallthru
      _
    // Predicated region
    $region54: #{tpu_custom_call.1} parent=1 // pred_check
      _
    $region55: #{tpu_custom_call.1} parent=1 // pred_check_branch
      %1146 = sbr.rel (0) target = $region57
    $region56: #{tpu_custom_call.1} parent=1 // pred_region
      %1147 = dma.done [#allocation4], 16
    $region57: #{tpu_custom_call.1} parent=1 // pred_fallthru
      _
    %1148 = vsyncpa [#allocation3], 1
    %1149 = vsyncpa [#allocation6], 1
    %1150 = vsyncpa [#allocation4], 1

</llo_original>
